<compile_context>
chip_gen: v7x
topology: tpu7x:2x2x1
jax: 0.10.0
libtpu: 0.0.40
codegen_flags: <defaults>
</compile_context>

<pallas_src>
import numpy as np

import jax
import jax.numpy as jnp
from jax.experimental import pallas as pl
from jax.experimental.pallas import tpu as pltpu


def embedding_kernel(ids_ref, emb_ref, o_ref):
    """One grid step: gather `block_rows` embedding rows.

    ids_ref : (R, 1)  int32   flattened token ids for this block
    emb_ref : (V, D)  float   full embedding table, resident in VMEM
    o_ref   : (R, D)  float   gathered embeddings
    """
    ids = ids_ref[...]                                             # (R, 1) int32
    rows = ids.shape[0]
    vocab = emb_ref.shape[0]

    # Build the one-hot selector in-kernel from integer ids (no one-hot in HBM).
    cols = jax.lax.broadcasted_iota(jnp.int32, (rows, vocab), 1)   # (R, V)
    onehot = (ids == cols).astype(emb_ref.dtype)                   # (R, V)

    # Row gather as a single MXU matmul: (R, V) @ (V, D) -> (R, D).
    # HIGHEST precision keeps the f32 lookup essentially exact (selector is 1.0/0.0).
    gathered = jnp.dot(onehot, emb_ref[...],
                       preferred_element_type=jnp.float32,
                       precision=jax.lax.Precision.HIGHEST)
    o_ref[...] = gathered.astype(o_ref.dtype)


def embedding_pallas(x, emb_table, *, block_rows=256):
    """Pallas equivalent of `nn.Embedding.forward` (table lookup).

    x         : integer index tensor of arbitrary shape
    emb_table : (num_feat, hidden_dim) float embedding weight
    returns   : x.shape + (hidden_dim,) in emb_table.dtype
    NOTE: on v5e, block_rows=128 already saturates the 128x128 MXU.
    """
    orig_shape = x.shape
    vocab, hidden = emb_table.shape

    n = 1
    for s in orig_shape:
        n *= s
    ids = x.reshape(n).astype(jnp.int32)

    # Pad the flattened index stream up to a multiple of block_rows so every grid
    # step processes a full, sublane-aligned block (padding rows gather row 0 and
    # are sliced off afterwards).
    n_blocks = max(1, pl.cdiv(n, block_rows))
    n_pad = n_blocks * block_rows
    if n_pad != n:
        ids = jnp.pad(ids, (0, n_pad - n))
    ids2d = ids.reshape(n_pad, 1)

    out = pl.pallas_call(
        embedding_kernel,
        out_shape=jax.ShapeDtypeStruct((n_pad, hidden), emb_table.dtype),
        grid_spec=pltpu.PrefetchScalarGridSpec(
            num_scalar_prefetch=0,
            grid=(n_blocks,),
            in_specs=[
                # int32 ids for this block of rows
                pl.BlockSpec((block_rows, 1), lambda i: (i, 0)),
                # full embedding table, same block every step (stays in VMEM)
                pl.BlockSpec((vocab, hidden), lambda i: (0, 0)),
            ],
            out_specs=pl.BlockSpec((block_rows, hidden), lambda i: (i, 0)),
        ),
        compiler_params=pltpu.CompilerParams(
            dimension_semantics=("parallel",)),
    )(ids2d, emb_table)

    return out[:n].reshape(*orig_shape, hidden)


def embedding_reference(x, emb_table):
    """Pure-JAX mirror of the PyTorch forward: embedding(x)."""
    return jnp.take(emb_table, x, axis=0)


if __name__ == "__main__":
    # Small shapes consistent with the module's forward:
    #   x: (batch, seq) integer ids in [0, num_feat)
    NUM_FEAT = 64      # embedding vocabulary size
    HIDDEN = 128       # hidden_dim (lane-dense output slab)
    B, S = 4, 100      # 400 ids -> padded to 512 -> 2 grid steps of 256 rows

    key = jax.random.PRNGKey(0)
    k_x, k_w = jax.random.split(key)

    x = jax.random.randint(k_x, (B, S), 0, NUM_FEAT, dtype=jnp.int32)

    # xavier_uniform_ init of the embedding weight, as in the PyTorch __init__
    bound = float(np.sqrt(6.0 / (NUM_FEAT + HIDDEN)))
    emb = jax.random.uniform(k_w, (NUM_FEAT, HIDDEN), jnp.float32, -bound, bound)

    out = embedding_pallas(x, emb)
    out = jax.block_until_ready(out)

    ref = embedding_reference(x, emb)
    np.testing.assert_allclose(np.asarray(out), np.asarray(ref), rtol=1e-5, atol=1e-5)
    assert out.shape == (B, S, HIDDEN)
    print("KERNEL_OK")
</pallas_src>

<mosaic_0001>
module attributes {stable_mosaic.version = 11 : i64} {
  func.func @embedding_kernel(%arg0: i32, %arg1: memref<256x1xi32, #tpu.memory_space<vmem>>, %arg2: memref<64x128xf32, #tpu.memory_space<vmem>>, %arg3: memref<256x128xf32, #tpu.memory_space<vmem>>) attributes {dimension_semantics = [#tpu.dimension_semantics<parallel>], iteration_bounds = array<i64: 2>, scalar_prefetch = 0 : i64, scratch_operands = 0 : i64, tpu.core_type = #tpu.core_type<tc>, window_params = [{transform_indices = @transform_0, window_bounds = array<i64: 256, 1>}, {pipeline_mode = #tpu.pipeline_mode<synchronous>, transform_indices = @transform_1, window_bounds = array<i64: 64, 128>}, {transform_indices = @transform_2, window_bounds = array<i64: 256, 128>}]} {
    %c0 = arith.constant 0 : index
    %c0_0 = arith.constant 0 : index
    %0 = vector.load %arg1[%c0, %c0_0] : memref<256x1xi32, #tpu.memory_space<vmem>>, vector<256x1xi32>
    %1 = tpu.iota {dimensions = array<i32: 1>} : vector<256x64xi32>
    %2 = vector.broadcast %0 : vector<256x1xi32> to vector<256x64xi32>
    %3 = arith.cmpi eq, %2, %1 : vector<256x64xi32>
    %4 = arith.extui %3 : vector<256x64xi1> to vector<256x64xi32>
    %5 = arith.sitofp %4 : vector<256x64xi32> to vector<256x64xf32>
    %c0_1 = arith.constant 0 : index
    %c0_2 = arith.constant 0 : index
    %6 = vector.load %arg2[%c0_1, %c0_2] : memref<64x128xf32, #tpu.memory_space<vmem>>, vector<64x128xf32>
    %cst = arith.constant dense<0.000000e+00> : vector<256x128xf32>
    %7 = tpu.matmul %5, %6, %cst {dimension_numbers = #tpu.dot_dimension_numbers<[1], [0], [0], [1], [0, 0, 1, 1], [], []>, precision = #tpu.contract_precision<fp32>} : vector<256x64xf32>, vector<64x128xf32>, vector<256x128xf32> -> vector<256x128xf32>
    %c0_3 = arith.constant 0 : index
    %c0_4 = arith.constant 0 : index
    %8 = vector.load %arg3[%c0_3, %c0_4] : memref<256x128xf32, #tpu.memory_space<vmem>>, vector<256x128xf32>
    tpu.vector_store %arg3[%c0_3, %c0_4], %7 {strides = array<i32>} : memref<256x128xf32, #tpu.memory_space<vmem>>, vector<256x128xf32>,
    return
  }
  func.func @transform_0(%arg0: i32) -> (i32, i32) {
    %c0_i32 = arith.constant 0 : i32
    %c0_i32_0 = arith.constant 0 : i32
    return %arg0, %c0_i32 : i32, i32
  }
  func.func @transform_1(%arg0: i32) -> (i32, i32) {
    %c0_i32 = arith.constant 0 : i32
    %c0_i32_0 = arith.constant 0 : i32
    %c0_i32_1 = arith.constant 0 : i32
    return %c0_i32, %c0_i32_0 : i32, i32
  }
  func.func @transform_2(%arg0: i32) -> (i32, i32) {
    %c0_i32 = arith.constant 0 : i32
    %c0_i32_0 = arith.constant 0 : i32
    return %arg0, %c0_i32 : i32, i32
  }
}

</mosaic_0001>

<llo_original>
// kernel: tpu_custom_call.1
$region0: #{tpu_custom_call.1}
  #allocation0 [shape = 'u32[]', space=smem, size = 0x4, offset = 0x4, fixed_abs, tag = 'smem constant byte address 0x4 - core index']
  #allocation1 [shape = 'u32[144,128]{1,0:T(1,128)}', space=vmem, size = 0x12000, scoped, tag = 'internal scratch']
  %s0 = inlined_call_operand.vmem [shape: s32[512,1], index: 0, kind: input, shape index: {}]
  %s1 = inlined_call_operand.vmem [shape: f32[64,128], index: 1, kind: input, shape index: {}]
  %s2 = inlined_call_operand.hbm [shape: f32[512,128], index: 2, kind: output, shape index: {}]
  %s3 = sld [smem:[#allocation0]]
  $region41: #{tpu_custom_call.1} parent=0
    _
  %s5 = ssub.s32 1, %s3
  %s6 = scalar_select 0, %s5, %s3
  $region1: #{tpu_custom_call.1} parent=0
    #allocation2 [shape = 'u8[262144]{0}', space=vmem, size = 0x40000, scoped, tag = 'output window, operand 0']
    #allocation3 [shape = 's32[2]{0}', space=sflag, size = 0x8, scoped, tag = 'scoped memory for tpu_custom_call.1']
    %7 = vsyncpa [#allocation3], 0
    %s8 = scalar_lea.sflag [#allocation3], 1
    %9 = vsyncpa %s8, 0
    loop: start=0, step=1, limit=4
    $region2: #{tpu_custom_call.1} parent=1 // loop_pre_header
      _
    $region3: #{tpu_custom_call.1} parent=1 // loop_header
      %s11 = sphi 0, %s15
      %p12 = scmp.ge.s32.totalorder %s11, 4
      %s21 = sphi 0, %s23
      %s24 = sphi 0, %s21
      %s25 = sphi 0, %s24
      %s41 = sphi 0, %s25
      %s45 = sphi 0, %s45
      %s47 = sphi 0, %s45
      %s48 = sphi 0, %s47
      %s62 = sphi 0, %s48
      %s68 = sphi 0, %s70
      %s71 = sphi 0, %s68
      %s72 = sphi 0, %s71
      %s88 = sphi 0, %s72
    $region4: #{tpu_custom_call.1} parent=1 // loop_header_branch
      %14 = sbr.rel (%p12) target = $region8
    $region5: #{tpu_custom_call.1} parent=1 // loop_body
      %s16 = ssub.s32 %s11, 1
      %s17 = ssub.s32 %s11, 2
      %s18 = sadd.s32 %s11, 1
      %s19 = ssub.s32 %s11, %s18
      %p20 = scmp.eq.s32.totalorder %s19, 0
      %s22 = sadd.s32 %s21, 1
      %s23 = scalar_select %p20, %s21, %s22
      %p26 = pneg %p20
      %p27 = scmp.eq.s32.totalorder %s11, 1
      %p28 = por %p26, %p27
      %p29 = scmp.ne.s32.totalorder %s21, %s24
      %p30 = scmp.eq.s32.totalorder %s11, 0
      %p31 = por %p29, %p30
      %p32 = scmp.ne.s32.totalorder %s21, %s24
      %p33 = scmp.eq.s32.totalorder %s16, 1
      %p34 = por %p32, %p33
      %p35 = scmp.ne.s32.totalorder %s24, %s25
      %p36 = scmp.eq.s32.totalorder %s16, 0
      %p37 = por %p35, %p36
      %p38 = scmp.ne.s32.totalorder %s24, %s25
      %p39 = scmp.eq.s32.totalorder %s17, 1
      %p40 = por %p38, %p39
      %p42 = scmp.ne.s32.totalorder %s25, %s41
      %p43 = scmp.eq.s32.totalorder %s17, 0
      %p44 = por %p42, %p43
      %s46 = sadd.s32 %s45, 1
      %p49 = scmp.eq.s32.totalorder %s11, 1
      %p50 = scmp.ne.s32.totalorder %s45, %s47
      %p51 = scmp.eq.s32.totalorder %s11, 0
      %p52 = por %p50, %p51
      %p53 = scmp.ne.s32.totalorder %s45, %s47
      %p54 = scmp.eq.s32.totalorder %s16, 1
      %p55 = por %p53, %p54
      %p56 = scmp.ne.s32.totalorder %s47, %s48
      %p57 = scmp.eq.s32.totalorder %s16, 0
      %p58 = por %p56, %p57
      %p59 = scmp.ne.s32.totalorder %s47, %s48
      %p60 = scmp.eq.s32.totalorder %s17, 1
      %p61 = por %p59, %p60
      %p63 = scmp.ne.s32.totalorder %s48, %s62
      %p64 = scmp.eq.s32.totalorder %s17, 0
      %p65 = por %p63, %p64
      %s66 = ssub.s32 %s11, %s18
      %p67 = scmp.eq.s32.totalorder %s66, 0
      %s69 = sadd.s32 %s68, 1
      %s70 = scalar_select %p67, %s68, %s69
      %p73 = pneg %p67
      %p74 = scmp.eq.s32.totalorder %s11, 1
      %p75 = por %p73, %p74
      %p76 = scmp.ne.s32.totalorder %s68, %s71
      %p77 = scmp.eq.s32.totalorder %s11, 0
      %p78 = por %p76, %p77
      %p79 = scmp.ne.s32.totalorder %s68, %s71
      %p80 = scmp.eq.s32.totalorder %s16, 1
      %p81 = por %p79, %p80
      %p82 = scmp.ne.s32.totalorder %s71, %s72
      %p83 = scmp.eq.s32.totalorder %s16, 0
      %p84 = por %p82, %p83
      %p85 = scmp.ne.s32.totalorder %s71, %s72
      %p86 = scmp.eq.s32.totalorder %s17, 1
      %p87 = por %p85, %p86
      %p89 = scmp.ne.s32.totalorder %s72, %s88
      %p90 = scmp.eq.s32.totalorder %s17, 0
      %p91 = por %p89, %p90
      %p92 = scmp.le.s32.totalorder 1, %s11
      %p93 = scmp.lt.s32.totalorder %s11, 3
      %p94 = pnand %p92, %p93
      %p95 = pneg %p94
      // Predicated region
      $region9: #{tpu_custom_call.1} parent=5 // pred_check
        _
      $region10: #{tpu_custom_call.1} parent=5 // pred_check_branch
        %97 = sbr.rel (%p94) target = $region12
      $region11: #{tpu_custom_call.1} parent=5 // pred_region
        %s98 = ssub.s32 %s11, 1
        // Predicated region
        $region13: #{tpu_custom_call.1} parent=11 // pred_check
          %p99 = pneg %p58
        $region14: #{tpu_custom_call.1} parent=11 // pred_check_branch
          %101 = sbr.rel (%p99) target = $region16
        $region15: #{tpu_custom_call.1} parent=11 // pred_region
          _
        $region16: #{tpu_custom_call.1} parent=11 // pred_fallthru
          _
      $region12: #{tpu_custom_call.1} parent=5 // pred_fallthru
        _
      %p102 = scmp.lt.s32.totalorder %s11, 2
      // Predicated region
      $region17: #{tpu_custom_call.1} parent=5 // pred_check
        %p103 = pneg %p102
      $region18: #{tpu_custom_call.1} parent=5 // pred_check_branch
        %105 = sbr.rel (%p103) target = $region20
      $region19: #{tpu_custom_call.1} parent=5 // pred_region
        // Predicated region
        $region21: #{tpu_custom_call.1} parent=19 // pred_check
          %p106 = pneg %p31
        $region22: #{tpu_custom_call.1} parent=19 // pred_check_branch
          %108 = sbr.rel (%p106) target = $region24
        $region23: #{tpu_custom_call.1} parent=19 // pred_region
          %s109 = smul.u32 32, %s11
          %p110 = scmp.lt.s32.totalorder %s109, 63
          %s111 = scalar_select %p110, %s109, 63
          %s112 = smul.addr %s111, 8
          %s113 = scalar_lea.vmem %s0, %s112
          %s114 = smul.u32 32, %s11
        $region24: #{tpu_custom_call.1} parent=19 // pred_fallthru
          _
      $region20: #{tpu_custom_call.1} parent=5 // pred_fallthru
        _
      %p115 = scmp.le.s32.totalorder 1, %s11
      %p116 = scmp.lt.s32.totalorder %s11, 3
      %p117 = pnand %p115, %p116
      %p118 = pneg %p117
      // Predicated region
      $region25: #{tpu_custom_call.1} parent=5 // pred_check
        _
      $region26: #{tpu_custom_call.1} parent=5 // pred_check_branch
        %120 = sbr.rel (%p117) target = $region28
      $region27: #{tpu_custom_call.1} parent=5 // pred_region
        %s121 = ssub.s32 %s11, 1
        %s122 = smul.u32 32, %s16
        %p123 = scmp.lt.s32.totalorder %s122, 63
        %s124 = scalar_select %p123, %s122, 63
        %s125 = smul.addr %s124, 8
        %s126 = scalar_lea.vmem %s0, %s125
        %p127 = pneg %p37
        %p128 = pneg %p34
        %p129 = pneg %p58
        %p130 = pneg %p55
        %p131 = pneg %p84
        %p132 = pneg %p81
        %s133 = sand.u32 %s71, 1
        %s134 = scalar_lea.sflag [#allocation3], %s133
        %s135 = sand.u32 %s71, 1
        %s136 = smul.addr %s135, 256
        %s137 = scalar_lea.vmem [#allocation2], %s136
        %s138 = smul.u32 32, %s16
        %p139 = scmp.lt.s32.totalorder %s138, 63
        %s140 = scalar_select %p139, %s138, 63
        %s141 = smul.addr %s140, 8
        %s142 = scalar_lea.vmem %s0, %s141
        %s143 = smul.u32 32, %s16
        %s144 = smul.u32 32, %s16
        %v145 = vld [vmem:[%s142] sm:$0xff]
        %v146 = vld [vmem:[%s142 + $0x8] sm:$0xff]
        %v147 = vld [vmem:[%s142 + $0x10] sm:$0xff]
        %v148 = vld [vmem:[%s142 + $0x18] sm:$0xff]
        %v149 = vld [vmem:[%s142 + $0x20] sm:$0xff]
        %v150 = vld [vmem:[%s142 + $0x28] sm:$0xff]
        %v151 = vld [vmem:[%s142 + $0x30] sm:$0xff]
        %v152 = vld [vmem:[%s142 + $0x38] sm:$0xff]
        %v153 = vld [vmem:[%s142 + $0x40] sm:$0xff]
        %v154 = vld [vmem:[%s142 + $0x48] sm:$0xff]
        %v155 = vld [vmem:[%s142 + $0x50] sm:$0xff]
        %v156 = vld [vmem:[%s142 + $0x58] sm:$0xff]
        %v157 = vld [vmem:[%s142 + $0x60] sm:$0xff]
        %v158 = vld [vmem:[%s142 + $0x68] sm:$0xff]
        %v159 = vld [vmem:[%s142 + $0x70] sm:$0xff]
        %v160 = vld [vmem:[%s142 + $0x78] sm:$0xff]
        %v161 = vld [vmem:[%s142 + $0x80] sm:$0xff]
        %v162 = vld [vmem:[%s142 + $0x88] sm:$0xff]
        %v163 = vld [vmem:[%s142 + $0x90] sm:$0xff]
        %v164 = vld [vmem:[%s142 + $0x98] sm:$0xff]
        %v165 = vld [vmem:[%s142 + $0xa0] sm:$0xff]
        %v166 = vld [vmem:[%s142 + $0xa8] sm:$0xff]
        %v167 = vld [vmem:[%s142 + $0xb0] sm:$0xff]
        %v168 = vld [vmem:[%s142 + $0xb8] sm:$0xff]
        %v169 = vld [vmem:[%s142 + $0xc0] sm:$0xff]
        %v170 = vld [vmem:[%s142 + $0xc8] sm:$0xff]
        %v171 = vld [vmem:[%s142 + $0xd0] sm:$0xff]
        %v172 = vld [vmem:[%s142 + $0xd8] sm:$0xff]
        %v173 = vld [vmem:[%s142 + $0xe0] sm:$0xff]
        %v174 = vld [vmem:[%s142 + $0xe8] sm:$0xff]
        %v175 = vld [vmem:[%s142 + $0xf0] sm:$0xff]
        %v176 = vld [vmem:[%s142 + $0xf8] sm:$0xff]
        %v177 = vlaneseq
        %v178 = vand.u32 %v177, 127
        %179 = vset.pattern.permute.xlu0 0
        %180 = vperm.xlu0 %179, %v145
        %v181 = vpop.permute.xlu0 %180
        %182 = vset.pattern.permute.xlu0 0
        %183 = vperm.xlu0 %182, %v146
        %v184 = vpop.permute.xlu0 %183
        %185 = vset.pattern.permute.xlu0 0
        %186 = vperm.xlu0 %185, %v147
        %v187 = vpop.permute.xlu0 %186
        %188 = vset.pattern.permute.xlu0 0
        %189 = vperm.xlu0 %188, %v148
        %v190 = vpop.permute.xlu0 %189
        %191 = vset.pattern.permute.xlu0 0
        %192 = vperm.xlu0 %191, %v149
        %v193 = vpop.permute.xlu0 %192
        %194 = vset.pattern.permute.xlu0 0
        %195 = vperm.xlu0 %194, %v150
        %v196 = vpop.permute.xlu0 %195
        %197 = vset.pattern.permute.xlu0 0
        %198 = vperm.xlu0 %197, %v151
        %v199 = vpop.permute.xlu0 %198
        %200 = vset.pattern.permute.xlu0 0
        %201 = vperm.xlu0 %200, %v152
        %v202 = vpop.permute.xlu0 %201
        %203 = vset.pattern.permute.xlu0 0
        %204 = vperm.xlu0 %203, %v153
        %v205 = vpop.permute.xlu0 %204
        %206 = vset.pattern.permute.xlu0 0
        %207 = vperm.xlu0 %206, %v154
        %v208 = vpop.permute.xlu0 %207
        %209 = vset.pattern.permute.xlu0 0
        %210 = vperm.xlu0 %209, %v155
        %v211 = vpop.permute.xlu0 %210
        %212 = vset.pattern.permute.xlu0 0
        %213 = vperm.xlu0 %212, %v156
        %v214 = vpop.permute.xlu0 %213
        %215 = vset.pattern.permute.xlu0 0
        %216 = vperm.xlu0 %215, %v157
        %v217 = vpop.permute.xlu0 %216
        %218 = vset.pattern.permute.xlu0 0
        %219 = vperm.xlu0 %218, %v158
        %v220 = vpop.permute.xlu0 %219
        %221 = vset.pattern.permute.xlu0 0
        %222 = vperm.xlu0 %221, %v159
        %v223 = vpop.permute.xlu0 %222
        %224 = vset.pattern.permute.xlu0 0
        %225 = vperm.xlu0 %224, %v160
        %v226 = vpop.permute.xlu0 %225
        %227 = vset.pattern.permute.xlu0 0
        %228 = vperm.xlu0 %227, %v161
        %v229 = vpop.permute.xlu0 %228
        %230 = vset.pattern.permute.xlu0 0
        %231 = vperm.xlu0 %230, %v162
        %v232 = vpop.permute.xlu0 %231
        %233 = vset.pattern.permute.xlu0 0
        %234 = vperm.xlu0 %233, %v163
        %v235 = vpop.permute.xlu0 %234
        %236 = vset.pattern.permute.xlu0 0
        %237 = vperm.xlu0 %236, %v164
        %v238 = vpop.permute.xlu0 %237
        %239 = vset.pattern.permute.xlu0 0
        %240 = vperm.xlu0 %239, %v165
        %v241 = vpop.permute.xlu0 %240
        %242 = vset.pattern.permute.xlu0 0
        %243 = vperm.xlu0 %242, %v166
        %v244 = vpop.permute.xlu0 %243
        %245 = vset.pattern.permute.xlu0 0
        %246 = vperm.xlu0 %245, %v167
        %v247 = vpop.permute.xlu0 %246
        %248 = vset.pattern.permute.xlu0 0
        %249 = vperm.xlu0 %248, %v168
        %v250 = vpop.permute.xlu0 %249
        %251 = vset.pattern.permute.xlu0 0
        %252 = vperm.xlu0 %251, %v169
        %v253 = vpop.permute.xlu0 %252
        %254 = vset.pattern.permute.xlu0 0
        %255 = vperm.xlu0 %254, %v170
        %v256 = vpop.permute.xlu0 %255
        %257 = vset.pattern.permute.xlu0 0
        %258 = vperm.xlu0 %257, %v171
        %v259 = vpop.permute.xlu0 %258
        %260 = vset.pattern.permute.xlu0 0
        %261 = vperm.xlu0 %260, %v172
        %v262 = vpop.permute.xlu0 %261
        %263 = vset.pattern.permute.xlu0 0
        %264 = vperm.xlu0 %263, %v173
        %v265 = vpop.permute.xlu0 %264
        %266 = vset.pattern.permute.xlu0 0
        %267 = vperm.xlu0 %266, %v174
        %v268 = vpop.permute.xlu0 %267
        %269 = vset.pattern.permute.xlu0 0
        %270 = vperm.xlu0 %269, %v175
        %v271 = vpop.permute.xlu0 %270
        %272 = vset.pattern.permute.xlu0 0
        %273 = vperm.xlu0 %272, %v176
        %v274 = vpop.permute.xlu0 %273
        %vm275 = vcmp.eq.s32.totalorder %v181, %v178
        %vm276 = vcmp.eq.s32.totalorder %v184, %v178
        %vm277 = vcmp.eq.s32.totalorder %v187, %v178
        %vm278 = vcmp.eq.s32.totalorder %v190, %v178
        %vm279 = vcmp.eq.s32.totalorder %v193, %v178
        %vm280 = vcmp.eq.s32.totalorder %v196, %v178
        %vm281 = vcmp.eq.s32.totalorder %v199, %v178
        %vm282 = vcmp.eq.s32.totalorder %v202, %v178
        %vm283 = vcmp.eq.s32.totalorder %v205, %v178
        %vm284 = vcmp.eq.s32.totalorder %v208, %v178
        %vm285 = vcmp.eq.s32.totalorder %v211, %v178
        %vm286 = vcmp.eq.s32.totalorder %v214, %v178
        %vm287 = vcmp.eq.s32.totalorder %v217, %v178
        %vm288 = vcmp.eq.s32.totalorder %v220, %v178
        %vm289 = vcmp.eq.s32.totalorder %v223, %v178
        %vm290 = vcmp.eq.s32.totalorder %v226, %v178
        %vm291 = vcmp.eq.s32.totalorder %v229, %v178
        %vm292 = vcmp.eq.s32.totalorder %v232, %v178
        %vm293 = vcmp.eq.s32.totalorder %v235, %v178
        %vm294 = vcmp.eq.s32.totalorder %v238, %v178
        %vm295 = vcmp.eq.s32.totalorder %v241, %v178
        %vm296 = vcmp.eq.s32.totalorder %v244, %v178
        %vm297 = vcmp.eq.s32.totalorder %v247, %v178
        %vm298 = vcmp.eq.s32.totalorder %v250, %v178
        %vm299 = vcmp.eq.s32.totalorder %v253, %v178
        %vm300 = vcmp.eq.s32.totalorder %v256, %v178
        %vm301 = vcmp.eq.s32.totalorder %v259, %v178
        %vm302 = vcmp.eq.s32.totalorder %v262, %v178
        %vm303 = vcmp.eq.s32.totalorder %v265, %v178
        %vm304 = vcmp.eq.s32.totalorder %v268, %v178
        %vm305 = vcmp.eq.s32.totalorder %v271, %v178
        %vm306 = vcmp.eq.s32.totalorder %v274, %v178
        %v307 = vsel %vm275, 1, 0
        %v308 = vsel %vm276, 1, 0
        %v309 = vsel %vm277, 1, 0
        %v310 = vsel %vm278, 1, 0
        %v311 = vsel %vm279, 1, 0
        %v312 = vsel %vm280, 1, 0
        %v313 = vsel %vm281, 1, 0
        %v314 = vsel %vm282, 1, 0
        %v315 = vsel %vm283, 1, 0
        %v316 = vsel %vm284, 1, 0
        %v317 = vsel %vm285, 1, 0
        %v318 = vsel %vm286, 1, 0
        %v319 = vsel %vm287, 1, 0
        %v320 = vsel %vm288, 1, 0
        %v321 = vsel %vm289, 1, 0
        %v322 = vsel %vm290, 1, 0
        %v323 = vsel %vm291, 1, 0
        %v324 = vsel %vm292, 1, 0
        %v325 = vsel %vm293, 1, 0
        %v326 = vsel %vm294, 1, 0
        %v327 = vsel %vm295, 1, 0
        %v328 = vsel %vm296, 1, 0
        %v329 = vsel %vm297, 1, 0
        %v330 = vsel %vm298, 1, 0
        %v331 = vsel %vm299, 1, 0
        %v332 = vsel %vm300, 1, 0
        %v333 = vsel %vm301, 1, 0
        %v334 = vsel %vm302, 1, 0
        %v335 = vsel %vm303, 1, 0
        %v336 = vsel %vm304, 1, 0
        %v337 = vsel %vm305, 1, 0
        %v338 = vsel %vm306, 1, 0
        %v339 = vcvt.s32.f32 %v307
        %v340 = vcvt.s32.f32 %v308
        %v341 = vcvt.s32.f32 %v309
        %v342 = vcvt.s32.f32 %v310
        %v343 = vcvt.s32.f32 %v311
        %v344 = vcvt.s32.f32 %v312
        %v345 = vcvt.s32.f32 %v313
        %v346 = vcvt.s32.f32 %v314
        %v347 = vcvt.s32.f32 %v315
        %v348 = vcvt.s32.f32 %v316
        %v349 = vcvt.s32.f32 %v317
        %v350 = vcvt.s32.f32 %v318
        %v351 = vcvt.s32.f32 %v319
        %v352 = vcvt.s32.f32 %v320
        %v353 = vcvt.s32.f32 %v321
        %v354 = vcvt.s32.f32 %v322
        %v355 = vcvt.s32.f32 %v323
        %v356 = vcvt.s32.f32 %v324
        %v357 = vcvt.s32.f32 %v325
        %v358 = vcvt.s32.f32 %v326
        %v359 = vcvt.s32.f32 %v327
        %v360 = vcvt.s32.f32 %v328
        %v361 = vcvt.s32.f32 %v329
        %v362 = vcvt.s32.f32 %v330
        %v363 = vcvt.s32.f32 %v331
        %v364 = vcvt.s32.f32 %v332
        %v365 = vcvt.s32.f32 %v333
        %v366 = vcvt.s32.f32 %v334
        %v367 = vcvt.s32.f32 %v335
        %v368 = vcvt.s32.f32 %v336
        %v369 = vcvt.s32.f32 %v337
        %v370 = vcvt.s32.f32 %v338
        %v371 = vld [vmem:[%s1] sm:$0xff]
        %v372 = vld [vmem:[%s1 + $0x8] sm:$0xff]
        %v373 = vld [vmem:[%s1 + $0x10] sm:$0xff]
        %v374 = vld [vmem:[%s1 + $0x18] sm:$0xff]
        %v375 = vld [vmem:[%s1 + $0x20] sm:$0xff]
        %v376 = vld [vmem:[%s1 + $0x28] sm:$0xff]
        %v377 = vld [vmem:[%s1 + $0x30] sm:$0xff]
        %v378 = vld [vmem:[%s1 + $0x38] sm:$0xff]
        %vm379 = vcmask 523264
        %v381 = vsel %vm379, %v339, 0
        %v384 = vsel %vm379, %v340, 0
        %v387 = vsel %vm379, %v341, 0
        %v390 = vsel %vm379, %v342, 0
        %v393 = vsel %vm379, %v343, 0
        %v396 = vsel %vm379, %v344, 0
        %v399 = vsel %vm379, %v345, 0
        %v402 = vsel %vm379, %v346, 0
        %v405 = vsel %vm379, %v347, 0
        %v408 = vsel %vm379, %v348, 0
        %v411 = vsel %vm379, %v349, 0
        %v414 = vsel %vm379, %v350, 0
        %v417 = vsel %vm379, %v351, 0
        %v420 = vsel %vm379, %v352, 0
        %v423 = vsel %vm379, %v353, 0
        %v426 = vsel %vm379, %v354, 0
        %v429 = vsel %vm379, %v355, 0
        %v432 = vsel %vm379, %v356, 0
        %v435 = vsel %vm379, %v357, 0
        %v438 = vsel %vm379, %v358, 0
        %v441 = vsel %vm379, %v359, 0
        %v444 = vsel %vm379, %v360, 0
        %v447 = vsel %vm379, %v361, 0
        %v450 = vsel %vm379, %v362, 0
        %v453 = vsel %vm379, %v363, 0
        %v456 = vsel %vm379, %v364, 0
        %v459 = vsel %vm379, %v365, 0
        %v462 = vsel %vm379, %v366, 0
        %v465 = vsel %vm379, %v367, 0
        %v468 = vsel %vm379, %v368, 0
        %v471 = vsel %vm379, %v369, 0
        %v474 = vsel %vm379, %v370, 0
        %476 = vmatprep.subr.mxu0 0.0
        %v477 = vand.u32 %v371, 4294901760
        %478 = vmatpush1.msra.mxu0 %v477
        %479 = vmatprep.subr.mxu0 0.0
        %v480 = vand.u32 %v372, 4294901760
        %481 = vmatpush1.msra.mxu0 %v480
        %482 = vmatprep.subr.mxu0 0.0
        %v483 = vand.u32 %v373, 4294901760
        %484 = vmatpush1.msra.mxu0 %v483
        %485 = vmatprep.subr.mxu0 0.0
        %v486 = vand.u32 %v374, 4294901760
        %487 = vmatpush1.msra.mxu0 %v486
        %488 = vmatprep.subr.mxu0 0.0
        %v489 = vand.u32 %v375, 4294901760
        %490 = vmatpush1.msra.mxu0 %v489
        %491 = vmatprep.subr.mxu0 0.0
        %v492 = vand.u32 %v376, 4294901760
        %493 = vmatpush1.msra.mxu0 %v492
        %494 = vmatprep.subr.mxu0 0.0
        %v495 = vand.u32 %v377, 4294901760
        %496 = vmatpush1.msra.mxu0 %v495
        %497 = vmatprep.subr.mxu0 0.0
        %v498 = vand.u32 %v378, 4294901760
        %499 = vmatpush1.msra.mxu0 %v498
        %500 = vmatprep.subr.mxu0 0.0
        %501 = vmatpush1.msra.mxu0 0.0
        %502 = vmatprep.subr.mxu0 0.0
        %503 = vmatpush1.msra.mxu0 0.0
        %504 = vmatprep.subr.mxu0 0.0
        %505 = vmatpush1.msra.mxu0 0.0
        %506 = vmatprep.subr.mxu0 0.0
        %507 = vmatpush1.msra.mxu0 0.0
        %508 = vmatprep.subr.mxu0 0.0
        %509 = vmatpush1.msra.mxu0 0.0
        %510 = vmatprep.subr.mxu0 0.0
        %511 = vmatpush1.msra.mxu0 0.0
        %512 = vmatprep.subr.mxu0 0.0
        %513 = vmatpush1.msra.mxu0 0.0
        %514 = vmatprep.subr.mxu0 0.0
        %515 = vmatpush1.msra.mxu0 0.0
        %516 = vmatprep.subr.mxu0 0.0
        %517 = vmatpush1.msra.mxu0 0.0
        %518 = vmatprep.subr.mxu0 0.0
        %519 = vmatpush1.msra.mxu0 0.0
        %520 = vmatprep.subr.mxu0 0.0
        %521 = vmatpush1.msra.mxu0 0.0
        %522 = vmatprep.subr.mxu0 0.0
        %523 = vmatpush1.msra.mxu0 0.0
        %524 = vmatprep.subr.mxu0 0.0
        %525 = vmatpush1.msra.mxu0 0.0
        %526 = vmatprep.subr.mxu0 0.0
        %527 = vmatpush1.msra.mxu0 0.0
        %528 = vmatprep.subr.mxu0 0.0
        %529 = vmatpush1.msra.mxu0 0.0
        %530 = vmatprep.subr.mxu0 0.0
        %531 = vmatpush1.msra.mxu0 0.0
        %532 = vmatprep.subr.mxu0 0.0
        %533 = vmatpush1.msra.mxu0 0.0
        %534 = vmatprep.subr.mxu0 0.0
        %535 = vmatpush1.msra.mxu0 0.0
        %536 = vmatprep.subr.mxu0 0.0
        %537 = vmatpush1.msra.mxu0 0.0
        %538 = vmatprep.subr.mxu0 0.0
        %539 = vmatpush1.msra.mxu0 0.0
        %540 = vmatprep.subr.mxu0 0.0
        %541 = vmatpush1.msra.mxu0 0.0
        %542 = vmatprep.subr.mxu0 0.0
        %543 = vmatpush1.msra.mxu0 0.0
        %544 = vmatprep.subr.mxu0 0.0
        %545 = vmatpush1.msra.mxu0 0.0
        %546 = vmatprep.subr.mxu0 0.0
        %547 = vmatpush1.msra.mxu0 0.0
        %548 = vmatprep.mubr.f32.mxu0 0.0
        %v549 = vand.u32 %v381, 4294901760
        %v550 = vsub.f32 %v381, %v549
        %v551 = vand.u32 %v550, 4294901760
        %v552 = vsub.f32 %v550, %v551
        %v553 = vand.u32 %v552, 4294901760
        %554 = vmatmul.mubr.f32.gmra.mrb[0].mxu0 %v553
        %v555 = vpop.f32.mrb[0].mxu0
        %v556 = vadd.f32 0.0, %v555
        %v557 = vpop.f32.mrb[0].mxu0
        %558 = vmatprep.mubr.f32.mxu0 0.0
        %v559 = vand.u32 %v384, 4294901760
        %v560 = vsub.f32 %v384, %v559
        %v561 = vand.u32 %v560, 4294901760
        %v562 = vsub.f32 %v560, %v561
        %v563 = vand.u32 %v562, 4294901760
        %564 = vmatmul.mubr.f32.gmra.mrb[0].mxu0 %v563
        %v565 = vpop.f32.mrb[0].mxu0
        %v566 = vadd.f32 0.0, %v565
        %v567 = vpop.f32.mrb[0].mxu0
        %568 = vmatprep.mubr.f32.mxu0 0.0
        %v569 = vand.u32 %v387, 4294901760
        %v570 = vsub.f32 %v387, %v569
        %v571 = vand.u32 %v570, 4294901760
        %v572 = vsub.f32 %v570, %v571
        %v573 = vand.u32 %v572, 4294901760
        %574 = vmatmul.mubr.f32.gmra.mrb[0].mxu0 %v573
        %v575 = vpop.f32.mrb[0].mxu0
        %v576 = vadd.f32 0.0, %v575
        %v577 = vpop.f32.mrb[0].mxu0
        %578 = vmatprep.mubr.f32.mxu0 0.0
        %v579 = vand.u32 %v390, 4294901760
        %v580 = vsub.f32 %v390, %v579
        %v581 = vand.u32 %v580, 4294901760
        %v582 = vsub.f32 %v580, %v581
        %v583 = vand.u32 %v582, 4294901760
        %584 = vmatmul.mubr.f32.gmra.mrb[0].mxu0 %v583
        %v585 = vpop.f32.mrb[0].mxu0
        %v586 = vadd.f32 0.0, %v585
        %v587 = vpop.f32.mrb[0].mxu0
        %588 = vmatprep.mubr.f32.mxu0 0.0
        %v589 = vand.u32 %v393, 4294901760
        %v590 = vsub.f32 %v393, %v589
        %v591 = vand.u32 %v590, 4294901760
        %v592 = vsub.f32 %v590, %v591
        %v593 = vand.u32 %v592, 4294901760
        %594 = vmatmul.mubr.f32.gmra.mrb[0].mxu0 %v593
        %v595 = vpop.f32.mrb[0].mxu0
        %v596 = vadd.f32 0.0, %v595
        %v597 = vpop.f32.mrb[0].mxu0
        %598 = vmatprep.mubr.f32.mxu0 0.0
        %v599 = vand.u32 %v396, 4294901760
        %v600 = vsub.f32 %v396, %v599
        %v601 = vand.u32 %v600, 4294901760
        %v602 = vsub.f32 %v600, %v601
        %v603 = vand.u32 %v602, 4294901760
        %604 = vmatmul.mubr.f32.gmra.mrb[0].mxu0 %v603
        %v605 = vpop.f32.mrb[0].mxu0
        %v606 = vadd.f32 0.0, %v605
        %v607 = vpop.f32.mrb[0].mxu0
        %608 = vmatprep.mubr.f32.mxu0 0.0
        %v609 = vand.u32 %v399, 4294901760
        %v610 = vsub.f32 %v399, %v609
        %v611 = vand.u32 %v610, 4294901760
        %v612 = vsub.f32 %v610, %v611
        %v613 = vand.u32 %v612, 4294901760
        %614 = vmatmul.mubr.f32.gmra.mrb[0].mxu0 %v613
        %v615 = vpop.f32.mrb[0].mxu0
        %v616 = vadd.f32 0.0, %v615
        %v617 = vpop.f32.mrb[0].mxu0
        %618 = vmatprep.mubr.f32.mxu0 0.0
        %v619 = vand.u32 %v402, 4294901760
        %v620 = vsub.f32 %v402, %v619
        %v621 = vand.u32 %v620, 4294901760
        %v622 = vsub.f32 %v620, %v621
        %v623 = vand.u32 %v622, 4294901760
        %624 = vmatmul.mubr.f32.gmra.mrb[0].mxu0 %v623
        %v625 = vpop.f32.mrb[0].mxu0
        %v626 = vadd.f32 0.0, %v625
        %v627 = vpop.f32.mrb[0].mxu0
        %628 = vmatprep.mubr.f32.mxu0 0.0
        %v629 = vand.u32 %v405, 4294901760
        %v630 = vsub.f32 %v405, %v629
        %v631 = vand.u32 %v630, 4294901760
        %v632 = vsub.f32 %v630, %v631
        %v633 = vand.u32 %v632, 4294901760
        %634 = vmatmul.mubr.f32.gmra.mrb[0].mxu0 %v633
        %v635 = vpop.f32.mrb[0].mxu0
        %v636 = vadd.f32 0.0, %v635
        %v637 = vpop.f32.mrb[0].mxu0
        %638 = vmatprep.mubr.f32.mxu0 0.0
        %v639 = vand.u32 %v408, 4294901760
        %v640 = vsub.f32 %v408, %v639
        %v641 = vand.u32 %v640, 4294901760
        %v642 = vsub.f32 %v640, %v641
        %v643 = vand.u32 %v642, 4294901760
        %644 = vmatmul.mubr.f32.gmra.mrb[0].mxu0 %v643
        %v645 = vpop.f32.mrb[0].mxu0
        %v646 = vadd.f32 0.0, %v645
        %v647 = vpop.f32.mrb[0].mxu0
        %648 = vmatprep.mubr.f32.mxu0 0.0
        %v649 = vand.u32 %v411, 4294901760
        %v650 = vsub.f32 %v411, %v649
        %v651 = vand.u32 %v650, 4294901760
        %v652 = vsub.f32 %v650, %v651
        %v653 = vand.u32 %v652, 4294901760
        %654 = vmatmul.mubr.f32.gmra.mrb[0].mxu0 %v653
        %v655 = vpop.f32.mrb[0].mxu0
        %v656 = vadd.f32 0.0, %v655
        %v657 = vpop.f32.mrb[0].mxu0
        %658 = vmatprep.mubr.f32.mxu0 0.0
        %v659 = vand.u32 %v414, 4294901760
        %v660 = vsub.f32 %v414, %v659
        %v661 = vand.u32 %v660, 4294901760
        %v662 = vsub.f32 %v660, %v661
        %v663 = vand.u32 %v662, 4294901760
        %664 = vmatmul.mubr.f32.gmra.mrb[0].mxu0 %v663
        %v665 = vpop.f32.mrb[0].mxu0
        %v666 = vadd.f32 0.0, %v665
        %v667 = vpop.f32.mrb[0].mxu0
        %668 = vmatprep.mubr.f32.mxu0 0.0
        %v669 = vand.u32 %v417, 4294901760
        %v670 = vsub.f32 %v417, %v669
        %v671 = vand.u32 %v670, 4294901760
        %v672 = vsub.f32 %v670, %v671
        %v673 = vand.u32 %v672, 4294901760
        %674 = vmatmul.mubr.f32.gmra.mrb[0].mxu0 %v673
        %v675 = vpop.f32.mrb[0].mxu0
        %v676 = vadd.f32 0.0, %v675
        %v677 = vpop.f32.mrb[0].mxu0
        %678 = vmatprep.mubr.f32.mxu0 0.0
        %v679 = vand.u32 %v420, 4294901760
        %v680 = vsub.f32 %v420, %v679
        %v681 = vand.u32 %v680, 4294901760
        %v682 = vsub.f32 %v680, %v681
        %v683 = vand.u32 %v682, 4294901760
        %684 = vmatmul.mubr.f32.gmra.mrb[0].mxu0 %v683
        %v685 = vpop.f32.mrb[0].mxu0
        %v686 = vadd.f32 0.0, %v685
        %v687 = vpop.f32.mrb[0].mxu0
        %688 = vmatprep.mubr.f32.mxu0 0.0
        %v689 = vand.u32 %v423, 4294901760
        %v690 = vsub.f32 %v423, %v689
        %v691 = vand.u32 %v690, 4294901760
        %v692 = vsub.f32 %v690, %v691
        %v693 = vand.u32 %v692, 4294901760
        %694 = vmatmul.mubr.f32.gmra.mrb[0].mxu0 %v693
        %v695 = vpop.f32.mrb[0].mxu0
        %v696 = vadd.f32 0.0, %v695
        %v697 = vpop.f32.mrb[0].mxu0
        %698 = vmatprep.mubr.f32.mxu0 0.0
        %v699 = vand.u32 %v426, 4294901760
        %v700 = vsub.f32 %v426, %v699
        %v701 = vand.u32 %v700, 4294901760
        %v702 = vsub.f32 %v700, %v701
        %v703 = vand.u32 %v702, 4294901760
        %704 = vmatmul.mubr.f32.gmra.mrb[0].mxu0 %v703
        %v705 = vpop.f32.mrb[0].mxu0
        %v706 = vadd.f32 0.0, %v705
        %v707 = vpop.f32.mrb[0].mxu0
        %708 = vmatprep.mubr.f32.mxu0 0.0
        %v709 = vand.u32 %v429, 4294901760
        %v710 = vsub.f32 %v429, %v709
        %v711 = vand.u32 %v710, 4294901760
        %v712 = vsub.f32 %v710, %v711
        %v713 = vand.u32 %v712, 4294901760
        %714 = vmatmul.mubr.f32.gmra.mrb[0].mxu0 %v713
        %v715 = vpop.f32.mrb[0].mxu0
        %v716 = vadd.f32 0.0, %v715
        %v717 = vpop.f32.mrb[0].mxu0
        %718 = vmatprep.mubr.f32.mxu0 0.0
        %v719 = vand.u32 %v432, 4294901760
        %v720 = vsub.f32 %v432, %v719
        %v721 = vand.u32 %v720, 4294901760
        %v722 = vsub.f32 %v720, %v721
        %v723 = vand.u32 %v722, 4294901760
        %724 = vmatmul.mubr.f32.gmra.mrb[0].mxu0 %v723
        %v725 = vpop.f32.mrb[0].mxu0
        %v726 = vadd.f32 0.0, %v725
        %v727 = vpop.f32.mrb[0].mxu0
        %728 = vmatprep.mubr.f32.mxu0 0.0
        %v729 = vand.u32 %v435, 4294901760
        %v730 = vsub.f32 %v435, %v729
        %v731 = vand.u32 %v730, 4294901760
        %v732 = vsub.f32 %v730, %v731
        %v733 = vand.u32 %v732, 4294901760
        %734 = vmatmul.mubr.f32.gmra.mrb[0].mxu0 %v733
        %v735 = vpop.f32.mrb[0].mxu0
        %v736 = vadd.f32 0.0, %v735
        %v737 = vpop.f32.mrb[0].mxu0
        %738 = vmatprep.mubr.f32.mxu0 0.0
        %v739 = vand.u32 %v438, 4294901760
        %v740 = vsub.f32 %v438, %v739
        %v741 = vand.u32 %v740, 4294901760
        %v742 = vsub.f32 %v740, %v741
        %v743 = vand.u32 %v742, 4294901760
        %744 = vmatmul.mubr.f32.gmra.mrb[0].mxu0 %v743
        %v745 = vpop.f32.mrb[0].mxu0
        %v746 = vadd.f32 0.0, %v745
        %v747 = vpop.f32.mrb[0].mxu0
        %748 = vmatprep.mubr.f32.mxu0 0.0
        %v749 = vand.u32 %v441, 4294901760
        %v750 = vsub.f32 %v441, %v749
        %v751 = vand.u32 %v750, 4294901760
        %v752 = vsub.f32 %v750, %v751
        %v753 = vand.u32 %v752, 4294901760
        %754 = vmatmul.mubr.f32.gmra.mrb[0].mxu0 %v753
        %v755 = vpop.f32.mrb[0].mxu0
        %v756 = vadd.f32 0.0, %v755
        %v757 = vpop.f32.mrb[0].mxu0
        %758 = vmatprep.mubr.f32.mxu0 0.0
        %v759 = vand.u32 %v444, 4294901760
        %v760 = vsub.f32 %v444, %v759
        %v761 = vand.u32 %v760, 4294901760
        %v762 = vsub.f32 %v760, %v761
        %v763 = vand.u32 %v762, 4294901760
        %764 = vmatmul.mubr.f32.gmra.mrb[0].mxu0 %v763
        %v765 = vpop.f32.mrb[0].mxu0
        %v766 = vadd.f32 0.0, %v765
        %v767 = vpop.f32.mrb[0].mxu0
        %768 = vmatprep.mubr.f32.mxu0 0.0
        %v769 = vand.u32 %v447, 4294901760
        %v770 = vsub.f32 %v447, %v769
        %v771 = vand.u32 %v770, 4294901760
        %v772 = vsub.f32 %v770, %v771
        %v773 = vand.u32 %v772, 4294901760
        %774 = vmatmul.mubr.f32.gmra.mrb[0].mxu0 %v773
        %v775 = vpop.f32.mrb[0].mxu0
        %v776 = vadd.f32 0.0, %v775
        %v777 = vpop.f32.mrb[0].mxu0
        %778 = vmatprep.mubr.f32.mxu0 0.0
        %v779 = vand.u32 %v450, 4294901760
        %v780 = vsub.f32 %v450, %v779
        %v781 = vand.u32 %v780, 4294901760
        %v782 = vsub.f32 %v780, %v781
        %v783 = vand.u32 %v782, 4294901760
        %784 = vmatmul.mubr.f32.gmra.mrb[0].mxu0 %v783
        %v785 = vpop.f32.mrb[0].mxu0
        %v786 = vadd.f32 0.0, %v785
        %v787 = vpop.f32.mrb[0].mxu0
        %788 = vmatprep.mubr.f32.mxu0 0.0
        %v789 = vand.u32 %v453, 4294901760
        %v790 = vsub.f32 %v453, %v789
        %v791 = vand.u32 %v790, 4294901760
        %v792 = vsub.f32 %v790, %v791
        %v793 = vand.u32 %v792, 4294901760
        %794 = vmatmul.mubr.f32.gmra.mrb[0].mxu0 %v793
        %v795 = vpop.f32.mrb[0].mxu0
        %v796 = vadd.f32 0.0, %v795
        %v797 = vpop.f32.mrb[0].mxu0
        %798 = vmatprep.mubr.f32.mxu0 0.0
        %v799 = vand.u32 %v456, 4294901760
        %v800 = vsub.f32 %v456, %v799
        %v801 = vand.u32 %v800, 4294901760
        %v802 = vsub.f32 %v800, %v801
        %v803 = vand.u32 %v802, 4294901760
        %804 = vmatmul.mubr.f32.gmra.mrb[0].mxu0 %v803
        %v805 = vpop.f32.mrb[0].mxu0
        %v806 = vadd.f32 0.0, %v805
        %v807 = vpop.f32.mrb[0].mxu0
        %808 = vmatprep.mubr.f32.mxu0 0.0
        %v809 = vand.u32 %v459, 4294901760
        %v810 = vsub.f32 %v459, %v809
        %v811 = vand.u32 %v810, 4294901760
        %v812 = vsub.f32 %v810, %v811
        %v813 = vand.u32 %v812, 4294901760
        %814 = vmatmul.mubr.f32.gmra.mrb[0].mxu0 %v813
        %v815 = vpop.f32.mrb[0].mxu0
        %v816 = vadd.f32 0.0, %v815
        %v817 = vpop.f32.mrb[0].mxu0
        %818 = vmatprep.mubr.f32.mxu0 0.0
        %v819 = vand.u32 %v462, 4294901760
        %v820 = vsub.f32 %v462, %v819
        %v821 = vand.u32 %v820, 4294901760
        %v822 = vsub.f32 %v820, %v821
        %v823 = vand.u32 %v822, 4294901760
        %824 = vmatmul.mubr.f32.gmra.mrb[0].mxu0 %v823
        %v825 = vpop.f32.mrb[0].mxu0
        %v826 = vadd.f32 0.0, %v825
        %v827 = vpop.f32.mrb[0].mxu0
        %828 = vmatprep.mubr.f32.mxu0 0.0
        %v829 = vand.u32 %v465, 4294901760
        %v830 = vsub.f32 %v465, %v829
        %v831 = vand.u32 %v830, 4294901760
        %v832 = vsub.f32 %v830, %v831
        %v833 = vand.u32 %v832, 4294901760
        %834 = vmatmul.mubr.f32.gmra.mrb[0].mxu0 %v833
        %v835 = vpop.f32.mrb[0].mxu0
        %v836 = vadd.f32 0.0, %v835
        %v837 = vpop.f32.mrb[0].mxu0
        %838 = vmatprep.mubr.f32.mxu0 0.0
        %v839 = vand.u32 %v468, 4294901760
        %v840 = vsub.f32 %v468, %v839
        %v841 = vand.u32 %v840, 4294901760
        %v842 = vsub.f32 %v840, %v841
        %v843 = vand.u32 %v842, 4294901760
        %844 = vmatmul.mubr.f32.gmra.mrb[0].mxu0 %v843
        %v845 = vpop.f32.mrb[0].mxu0
        %v846 = vadd.f32 0.0, %v845
        %v847 = vpop.f32.mrb[0].mxu0
        %848 = vmatprep.mubr.f32.mxu0 0.0
        %v849 = vand.u32 %v471, 4294901760
        %v850 = vsub.f32 %v471, %v849
        %v851 = vand.u32 %v850, 4294901760
        %v852 = vsub.f32 %v850, %v851
        %v853 = vand.u32 %v852, 4294901760
        %854 = vmatmul.mubr.f32.gmra.mrb[0].mxu0 %v853
        %v855 = vpop.f32.mrb[0].mxu0
        %v856 = vadd.f32 0.0, %v855
        %v857 = vpop.f32.mrb[0].mxu0
        %858 = vmatprep.mubr.f32.mxu0 0.0
        %v859 = vand.u32 %v474, 4294901760
        %v860 = vsub.f32 %v474, %v859
        %v861 = vand.u32 %v860, 4294901760
        %v862 = vsub.f32 %v860, %v861
        %v863 = vand.u32 %v862, 4294901760
        %864 = vmatmul.mubr.f32.gmra.mrb[0].mxu0 %v863
        %v865 = vpop.f32.mrb[0].mxu0
        %v866 = vadd.f32 0.0, %v865
        %v867 = vpop.f32.mrb[0].mxu0
        %868 = vdwg.mxu0
        %869 = vmatprep.subr.mxu0 0.0
        %v870 = vand.u32 %v371, 4294901760
        %v871 = vsub.f32 %v371, %v870
        %v872 = vand.u32 %v871, 4294901760
        %v873 = vsub.f32 %v871, %v872
        %v874 = vand.u32 %v873, 4294901760
        %875 = vmatpush1.msra.mxu0 %v874
        %876 = vmatprep.subr.mxu0 0.0
        %v877 = vand.u32 %v372, 4294901760
        %v878 = vsub.f32 %v372, %v877
        %v879 = vand.u32 %v878, 4294901760
        %v880 = vsub.f32 %v878, %v879
        %v881 = vand.u32 %v880, 4294901760
        %882 = vmatpush1.msra.mxu0 %v881
        %883 = vmatprep.subr.mxu0 0.0
        %v884 = vand.u32 %v373, 4294901760
        %v885 = vsub.f32 %v373, %v884
        %v886 = vand.u32 %v885, 4294901760
        %v887 = vsub.f32 %v885, %v886
        %v888 = vand.u32 %v887, 4294901760
        %889 = vmatpush1.msra.mxu0 %v888
        %890 = vmatprep.subr.mxu0 0.0
        %v891 = vand.u32 %v374, 4294901760
        %v892 = vsub.f32 %v374, %v891
        %v893 = vand.u32 %v892, 4294901760
        %v894 = vsub.f32 %v892, %v893
        %v895 = vand.u32 %v894, 4294901760
        %896 = vmatpush1.msra.mxu0 %v895
        %897 = vmatprep.subr.mxu0 0.0
        %v898 = vand.u32 %v375, 4294901760
        %v899 = vsub.f32 %v375, %v898
        %v900 = vand.u32 %v899, 4294901760
        %v901 = vsub.f32 %v899, %v900
        %v902 = vand.u32 %v901, 4294901760
        %903 = vmatpush1.msra.mxu0 %v902
        %904 = vmatprep.subr.mxu0 0.0
        %v905 = vand.u32 %v376, 4294901760
        %v906 = vsub.f32 %v376, %v905
        %v907 = vand.u32 %v906, 4294901760
        %v908 = vsub.f32 %v906, %v907
        %v909 = vand.u32 %v908, 4294901760
        %910 = vmatpush1.msra.mxu0 %v909
        %911 = vmatprep.subr.mxu0 0.0
        %v912 = vand.u32 %v377, 4294901760
        %v913 = vsub.f32 %v377, %v912
        %v914 = vand.u32 %v913, 4294901760
        %v915 = vsub.f32 %v913, %v914
        %v916 = vand.u32 %v915, 4294901760
        %917 = vmatpush1.msra.mxu0 %v916
        %918 = vmatprep.subr.mxu0 0.0
        %v919 = vand.u32 %v378, 4294901760
        %v920 = vsub.f32 %v378, %v919
        %v921 = vand.u32 %v920, 4294901760
        %v922 = vsub.f32 %v920, %v921
        %v923 = vand.u32 %v922, 4294901760
        %924 = vmatpush1.msra.mxu0 %v923
        %925 = vmatprep.subr.mxu0 0.0
        %926 = vmatpush1.msra.mxu0 0.0
        %927 = vmatprep.subr.mxu0 0.0
        %928 = vmatpush1.msra.mxu0 0.0
        %929 = vmatprep.subr.mxu0 0.0
        %930 = vmatpush1.msra.mxu0 0.0
        %931 = vmatprep.subr.mxu0 0.0
        %932 = vmatpush1.msra.mxu0 0.0
        %933 = vmatprep.subr.mxu0 0.0
        %934 = vmatpush1.msra.mxu0 0.0
        %935 = vmatprep.subr.mxu0 0.0
        %936 = vmatpush1.msra.mxu0 0.0
        %937 = vmatprep.subr.mxu0 0.0
        %938 = vmatpush1.msra.mxu0 0.0
        %939 = vmatprep.subr.mxu0 0.0
        %940 = vmatpush1.msra.mxu0 0.0
        %941 = vmatprep.subr.mxu0 0.0
        %942 = vmatpush1.msra.mxu0 0.0
        %943 = vmatprep.subr.mxu0 0.0
        %944 = vmatpush1.msra.mxu0 0.0
        %945 = vmatprep.subr.mxu0 0.0
        %946 = vmatpush1.msra.mxu0 0.0
        %947 = vmatprep.subr.mxu0 0.0
        %948 = vmatpush1.msra.mxu0 0.0
        %949 = vmatprep.subr.mxu0 0.0
        %950 = vmatpush1.msra.mxu0 0.0
        %951 = vmatprep.subr.mxu0 0.0
        %952 = vmatpush1.msra.mxu0 0.0
        %953 = vmatprep.subr.mxu0 0.0
        %954 = vmatpush1.msra.mxu0 0.0
        %955 = vmatprep.subr.mxu0 0.0
        %956 = vmatpush1.msra.mxu0 0.0
        %957 = vmatprep.subr.mxu0 0.0
        %958 = vmatpush1.msra.mxu0 0.0
        %959 = vmatprep.subr.mxu0 0.0
        %960 = vmatpush1.msra.mxu0 0.0
        %961 = vmatprep.subr.mxu0 0.0
        %962 = vmatpush1.msra.mxu0 0.0
        %963 = vmatprep.subr.mxu0 0.0
        %964 = vmatpush1.msra.mxu0 0.0
        %965 = vmatprep.subr.mxu0 0.0
        %966 = vmatpush1.msra.mxu0 0.0
        %967 = vmatprep.subr.mxu0 0.0
        %968 = vmatpush1.msra.mxu0 0.0
        %969 = vmatprep.subr.mxu0 0.0
        %970 = vmatpush1.msra.mxu0 0.0
        %971 = vmatprep.subr.mxu0 0.0
        %972 = vmatpush1.msra.mxu0 0.0
        %973 = vmatprep.mubr.f32.mxu0 0.0
        %v974 = vand.u32 %v381, 4294901760
        %975 = vmatmul.mubr.f32.gmra.mrb[0].mxu0 %v974
        %v976 = vpop.f32.mrb[0].mxu0
        %v977 = vadd.f32 %v556, %v976
        %v978 = vpop.f32.mrb[0].mxu0
        %979 = vmatprep.mubr.f32.mxu0 0.0
        %v980 = vand.u32 %v384, 4294901760
        %981 = vmatmul.mubr.f32.gmra.mrb[0].mxu0 %v980
        %v982 = vpop.f32.mrb[0].mxu0
        %v983 = vadd.f32 %v566, %v982
        %v984 = vpop.f32.mrb[0].mxu0
        %985 = vmatprep.mubr.f32.mxu0 0.0
        %v986 = vand.u32 %v387, 4294901760
        %987 = vmatmul.mubr.f32.gmra.mrb[0].mxu0 %v986
        %v988 = vpop.f32.mrb[0].mxu0
        %v989 = vadd.f32 %v576, %v988
        %v990 = vpop.f32.mrb[0].mxu0
        %991 = vmatprep.mubr.f32.mxu0 0.0
        %v992 = vand.u32 %v390, 4294901760
        %993 = vmatmul.mubr.f32.gmra.mrb[0].mxu0 %v992
        %v994 = vpop.f32.mrb[0].mxu0
        %v995 = vadd.f32 %v586, %v994
        %v996 = vpop.f32.mrb[0].mxu0
        %997 = vmatprep.mubr.f32.mxu0 0.0
        %v998 = vand.u32 %v393, 4294901760
        %999 = vmatmul.mubr.f32.gmra.mrb[0].mxu0 %v998
        %v1000 = vpop.f32.mrb[0].mxu0
        %v1001 = vadd.f32 %v596, %v1000
        %v1002 = vpop.f32.mrb[0].mxu0
        %1003 = vmatprep.mubr.f32.mxu0 0.0
        %v1004 = vand.u32 %v396, 4294901760
        %1005 = vmatmul.mubr.f32.gmra.mrb[0].mxu0 %v1004
        %v1006 = vpop.f32.mrb[0].mxu0
        %v1007 = vadd.f32 %v606, %v1006
        %v1008 = vpop.f32.mrb[0].mxu0
        %1009 = vmatprep.mubr.f32.mxu0 0.0
        %v1010 = vand.u32 %v399, 4294901760
        %1011 = vmatmul.mubr.f32.gmra.mrb[0].mxu0 %v1010
        %v1012 = vpop.f32.mrb[0].mxu0
        %v1013 = vadd.f32 %v616, %v1012
        %v1014 = vpop.f32.mrb[0].mxu0
        %1015 = vmatprep.mubr.f32.mxu0 0.0
        %v1016 = vand.u32 %v402, 4294901760
        %1017 = vmatmul.mubr.f32.gmra.mrb[0].mxu0 %v1016
        %v1018 = vpop.f32.mrb[0].mxu0
        %v1019 = vadd.f32 %v626, %v1018
        %v1020 = vpop.f32.mrb[0].mxu0
        %1021 = vmatprep.mubr.f32.mxu0 0.0
        %v1022 = vand.u32 %v405, 4294901760
        %1023 = vmatmul.mubr.f32.gmra.mrb[0].mxu0 %v1022
        %v1024 = vpop.f32.mrb[0].mxu0
        %v1025 = vadd.f32 %v636, %v1024
        %v1026 = vpop.f32.mrb[0].mxu0
        %1027 = vmatprep.mubr.f32.mxu0 0.0
        %v1028 = vand.u32 %v408, 4294901760
        %1029 = vmatmul.mubr.f32.gmra.mrb[0].mxu0 %v1028
        %v1030 = vpop.f32.mrb[0].mxu0
        %v1031 = vadd.f32 %v646, %v1030
        %v1032 = vpop.f32.mrb[0].mxu0
        %1033 = vmatprep.mubr.f32.mxu0 0.0
        %v1034 = vand.u32 %v411, 4294901760
        %1035 = vmatmul.mubr.f32.gmra.mrb[0].mxu0 %v1034
        %v1036 = vpop.f32.mrb[0].mxu0
        %v1037 = vadd.f32 %v656, %v1036
        %v1038 = vpop.f32.mrb[0].mxu0
        %1039 = vmatprep.mubr.f32.mxu0 0.0
        %v1040 = vand.u32 %v414, 4294901760
        %1041 = vmatmul.mubr.f32.gmra.mrb[0].mxu0 %v1040
        %v1042 = vpop.f32.mrb[0].mxu0
        %v1043 = vadd.f32 %v666, %v1042
        %v1044 = vpop.f32.mrb[0].mxu0
        %1045 = vmatprep.mubr.f32.mxu0 0.0
        %v1046 = vand.u32 %v417, 4294901760
        %1047 = vmatmul.mubr.f32.gmra.mrb[0].mxu0 %v1046
        %v1048 = vpop.f32.mrb[0].mxu0
        %v1049 = vadd.f32 %v676, %v1048
        %v1050 = vpop.f32.mrb[0].mxu0
        %1051 = vmatprep.mubr.f32.mxu0 0.0
        %v1052 = vand.u32 %v420, 4294901760
        %1053 = vmatmul.mubr.f32.gmra.mrb[0].mxu0 %v1052
        %v1054 = vpop.f32.mrb[0].mxu0
        %v1055 = vadd.f32 %v686, %v1054
        %v1056 = vpop.f32.mrb[0].mxu0
        %1057 = vmatprep.mubr.f32.mxu0 0.0
        %v1058 = vand.u32 %v423, 4294901760
        %1059 = vmatmul.mubr.f32.gmra.mrb[0].mxu0 %v1058
        %v1060 = vpop.f32.mrb[0].mxu0
        %v1061 = vadd.f32 %v696, %v1060
        %v1062 = vpop.f32.mrb[0].mxu0
        %1063 = vmatprep.mubr.f32.mxu0 0.0
        %v1064 = vand.u32 %v426, 4294901760
        %1065 = vmatmul.mubr.f32.gmra.mrb[0].mxu0 %v1064
        %v1066 = vpop.f32.mrb[0].mxu0
        %v1067 = vadd.f32 %v706, %v1066
        %v1068 = vpop.f32.mrb[0].mxu0
        %1069 = vmatprep.mubr.f32.mxu0 0.0
        %v1070 = vand.u32 %v429, 4294901760
        %1071 = vmatmul.mubr.f32.gmra.mrb[0].mxu0 %v1070
        %v1072 = vpop.f32.mrb[0].mxu0
        %v1073 = vadd.f32 %v716, %v1072
        %v1074 = vpop.f32.mrb[0].mxu0
        %1075 = vmatprep.mubr.f32.mxu0 0.0
        %v1076 = vand.u32 %v432, 4294901760
        %1077 = vmatmul.mubr.f32.gmra.mrb[0].mxu0 %v1076
        %v1078 = vpop.f32.mrb[0].mxu0
        %v1079 = vadd.f32 %v726, %v1078
        %v1080 = vpop.f32.mrb[0].mxu0
        %1081 = vmatprep.mubr.f32.mxu0 0.0
        %v1082 = vand.u32 %v435, 4294901760
        %1083 = vmatmul.mubr.f32.gmra.mrb[0].mxu0 %v1082
        %v1084 = vpop.f32.mrb[0].mxu0
        %v1085 = vadd.f32 %v736, %v1084
        %v1086 = vpop.f32.mrb[0].mxu0
        %1087 = vmatprep.mubr.f32.mxu0 0.0
        %v1088 = vand.u32 %v438, 4294901760
        %1089 = vmatmul.mubr.f32.gmra.mrb[0].mxu0 %v1088
        %v1090 = vpop.f32.mrb[0].mxu0
        %v1091 = vadd.f32 %v746, %v1090
        %v1092 = vpop.f32.mrb[0].mxu0
        %1093 = vmatprep.mubr.f32.mxu0 0.0
        %v1094 = vand.u32 %v441, 4294901760
        %1095 = vmatmul.mubr.f32.gmra.mrb[0].mxu0 %v1094
        %v1096 = vpop.f32.mrb[0].mxu0
        %v1097 = vadd.f32 %v756, %v1096
        %v1098 = vpop.f32.mrb[0].mxu0
        %1099 = vmatprep.mubr.f32.mxu0 0.0
        %v1100 = vand.u32 %v444, 4294901760
        %1101 = vmatmul.mubr.f32.gmra.mrb[0].mxu0 %v1100
        %v1102 = vpop.f32.mrb[0].mxu0
        %v1103 = vadd.f32 %v766, %v1102
        %v1104 = vpop.f32.mrb[0].mxu0
        %1105 = vmatprep.mubr.f32.mxu0 0.0
        %v1106 = vand.u32 %v447, 4294901760
        %1107 = vmatmul.mubr.f32.gmra.mrb[0].mxu0 %v1106
        %v1108 = vpop.f32.mrb[0].mxu0
        %v1109 = vadd.f32 %v776, %v1108
        %v1110 = vpop.f32.mrb[0].mxu0
        %1111 = vmatprep.mubr.f32.mxu0 0.0
        %v1112 = vand.u32 %v450, 4294901760
        %1113 = vmatmul.mubr.f32.gmra.mrb[0].mxu0 %v1112
        %v1114 = vpop.f32.mrb[0].mxu0
        %v1115 = vadd.f32 %v786, %v1114
        %v1116 = vpop.f32.mrb[0].mxu0
        %1117 = vmatprep.mubr.f32.mxu0 0.0
        %v1118 = vand.u32 %v453, 4294901760
        %1119 = vmatmul.mubr.f32.gmra.mrb[0].mxu0 %v1118
        %v1120 = vpop.f32.mrb[0].mxu0
        %v1121 = vadd.f32 %v796, %v1120
        %v1122 = vpop.f32.mrb[0].mxu0
        %1123 = vmatprep.mubr.f32.mxu0 0.0
        %v1124 = vand.u32 %v456, 4294901760
        %1125 = vmatmul.mubr.f32.gmra.mrb[0].mxu0 %v1124
        %v1126 = vpop.f32.mrb[0].mxu0
        %v1127 = vadd.f32 %v806, %v1126
        %v1128 = vpop.f32.mrb[0].mxu0
        %1129 = vmatprep.mubr.f32.mxu0 0.0
        %v1130 = vand.u32 %v459, 4294901760
        %1131 = vmatmul.mubr.f32.gmra.mrb[0].mxu0 %v1130
        %v1132 = vpop.f32.mrb[0].mxu0
        %v1133 = vadd.f32 %v816, %v1132
        %v1134 = vpop.f32.mrb[0].mxu0
        %1135 = vmatprep.mubr.f32.mxu0 0.0
        %v1136 = vand.u32 %v462, 4294901760
        %1137 = vmatmul.mubr.f32.gmra.mrb[0].mxu0 %v1136
        %v1138 = vpop.f32.mrb[0].mxu0
        %v1139 = vadd.f32 %v826, %v1138
        %v1140 = vpop.f32.mrb[0].mxu0
        %1141 = vmatprep.mubr.f32.mxu0 0.0
        %v1142 = vand.u32 %v465, 4294901760
        %1143 = vmatmul.mubr.f32.gmra.mrb[0].mxu0 %v1142
        %v1144 = vpop.f32.mrb[0].mxu0
        %v1145 = vadd.f32 %v836, %v1144
        %v1146 = vpop.f32.mrb[0].mxu0
        %1147 = vmatprep.mubr.f32.mxu0 0.0
        %v1148 = vand.u32 %v468, 4294901760
        %1149 = vmatmul.mubr.f32.gmra.mrb[0].mxu0 %v1148
        %v1150 = vpop.f32.mrb[0].mxu0
        %v1151 = vadd.f32 %v846, %v1150
        %v1152 = vpop.f32.mrb[0].mxu0
        %1153 = vmatprep.mubr.f32.mxu0 0.0
        %v1154 = vand.u32 %v471, 4294901760
        %1155 = vmatmul.mubr.f32.gmra.mrb[0].mxu0 %v1154
        %v1156 = vpop.f32.mrb[0].mxu0
        %v1157 = vadd.f32 %v856, %v1156
        %v1158 = vpop.f32.mrb[0].mxu0
        %1159 = vmatprep.mubr.f32.mxu0 0.0
        %v1160 = vand.u32 %v474, 4294901760
        %1161 = vmatmul.mubr.f32.gmra.mrb[0].mxu0 %v1160
        %v1162 = vpop.f32.mrb[0].mxu0
        %v1163 = vadd.f32 %v866, %v1162
        %v1164 = vpop.f32.mrb[0].mxu0
        %1165 = vdwg.mxu0
        %1166 = vmatprep.subr.mxu0 0.0
        %v1167 = vand.u32 %v371, 4294901760
        %v1168 = vsub.f32 %v371, %v1167
        %1169 = vmatpush1.msra.mxu0 %v1168
        %1170 = vmatprep.subr.mxu0 0.0
        %v1171 = vand.u32 %v372, 4294901760
        %v1172 = vsub.f32 %v372, %v1171
        %1173 = vmatpush1.msra.mxu0 %v1172
        %1174 = vmatprep.subr.mxu0 0.0
        %v1175 = vand.u32 %v373, 4294901760
        %v1176 = vsub.f32 %v373, %v1175
        %1177 = vmatpush1.msra.mxu0 %v1176
        %1178 = vmatprep.subr.mxu0 0.0
        %v1179 = vand.u32 %v374, 4294901760
        %v1180 = vsub.f32 %v374, %v1179
        %1181 = vmatpush1.msra.mxu0 %v1180
        %1182 = vmatprep.subr.mxu0 0.0
        %v1183 = vand.u32 %v375, 4294901760
        %v1184 = vsub.f32 %v375, %v1183
        %1185 = vmatpush1.msra.mxu0 %v1184
        %1186 = vmatprep.subr.mxu0 0.0
        %v1187 = vand.u32 %v376, 4294901760
        %v1188 = vsub.f32 %v376, %v1187
        %1189 = vmatpush1.msra.mxu0 %v1188
        %1190 = vmatprep.subr.mxu0 0.0
        %v1191 = vand.u32 %v377, 4294901760
        %v1192 = vsub.f32 %v377, %v1191
        %1193 = vmatpush1.msra.mxu0 %v1192
        %1194 = vmatprep.subr.mxu0 0.0
        %v1195 = vand.u32 %v378, 4294901760
        %v1196 = vsub.f32 %v378, %v1195
        %1197 = vmatpush1.msra.mxu0 %v1196
        %1198 = vmatprep.subr.mxu0 0.0
        %1199 = vmatpush1.msra.mxu0 0.0
        %1200 = vmatprep.subr.mxu0 0.0
        %1201 = vmatpush1.msra.mxu0 0.0
        %1202 = vmatprep.subr.mxu0 0.0
        %1203 = vmatpush1.msra.mxu0 0.0
        %1204 = vmatprep.subr.mxu0 0.0
        %1205 = vmatpush1.msra.mxu0 0.0
        %1206 = vmatprep.subr.mxu0 0.0
        %1207 = vmatpush1.msra.mxu0 0.0
        %1208 = vmatprep.subr.mxu0 0.0
        %1209 = vmatpush1.msra.mxu0 0.0
        %1210 = vmatprep.subr.mxu0 0.0
        %1211 = vmatpush1.msra.mxu0 0.0
        %1212 = vmatprep.subr.mxu0 0.0
        %1213 = vmatpush1.msra.mxu0 0.0
        %1214 = vmatprep.subr.mxu0 0.0
        %1215 = vmatpush1.msra.mxu0 0.0
        %1216 = vmatprep.subr.mxu0 0.0
        %1217 = vmatpush1.msra.mxu0 0.0
        %1218 = vmatprep.subr.mxu0 0.0
        %1219 = vmatpush1.msra.mxu0 0.0
        %1220 = vmatprep.subr.mxu0 0.0
        %1221 = vmatpush1.msra.mxu0 0.0
        %1222 = vmatprep.subr.mxu0 0.0
        %1223 = vmatpush1.msra.mxu0 0.0
        %1224 = vmatprep.subr.mxu0 0.0
        %1225 = vmatpush1.msra.mxu0 0.0
        %1226 = vmatprep.subr.mxu0 0.0
        %1227 = vmatpush1.msra.mxu0 0.0
        %1228 = vmatprep.subr.mxu0 0.0
        %1229 = vmatpush1.msra.mxu0 0.0
        %1230 = vmatprep.subr.mxu0 0.0
        %1231 = vmatpush1.msra.mxu0 0.0
        %1232 = vmatprep.subr.mxu0 0.0
        %1233 = vmatpush1.msra.mxu0 0.0
        %1234 = vmatprep.subr.mxu0 0.0
        %1235 = vmatpush1.msra.mxu0 0.0
        %1236 = vmatprep.subr.mxu0 0.0
        %1237 = vmatpush1.msra.mxu0 0.0
        %1238 = vmatprep.subr.mxu0 0.0
        %1239 = vmatpush1.msra.mxu0 0.0
        %1240 = vmatprep.subr.mxu0 0.0
        %1241 = vmatpush1.msra.mxu0 0.0
        %1242 = vmatprep.subr.mxu0 0.0
        %1243 = vmatpush1.msra.mxu0 0.0
        %1244 = vmatprep.subr.mxu0 0.0
        %1245 = vmatpush1.msra.mxu0 0.0
        %1246 = vmatprep.mubr.f32.mxu0 0.0
        %v1247 = vand.u32 %v381, 4294901760
        %v1248 = vsub.f32 %v381, %v1247
        %1249 = vmatmul.mubr.f32.gmra.mrb[0].mxu0 %v1248
        %v1250 = vpop.f32.mrb[0].mxu0
        %v1251 = vadd.f32 %v977, %v1250
        %v1252 = vpop.f32.mrb[0].mxu0
        %1253 = vmatprep.mubr.f32.mxu0 0.0
        %v1254 = vand.u32 %v384, 4294901760
        %v1255 = vsub.f32 %v384, %v1254
        %1256 = vmatmul.mubr.f32.gmra.mrb[0].mxu0 %v1255
        %v1257 = vpop.f32.mrb[0].mxu0
        %v1258 = vadd.f32 %v983, %v1257
        %v1259 = vpop.f32.mrb[0].mxu0
        %1260 = vmatprep.mubr.f32.mxu0 0.0
        %v1261 = vand.u32 %v387, 4294901760
        %v1262 = vsub.f32 %v387, %v1261
        %1263 = vmatmul.mubr.f32.gmra.mrb[0].mxu0 %v1262
        %v1264 = vpop.f32.mrb[0].mxu0
        %v1265 = vadd.f32 %v989, %v1264
        %v1266 = vpop.f32.mrb[0].mxu0
        %1267 = vmatprep.mubr.f32.mxu0 0.0
        %v1268 = vand.u32 %v390, 4294901760
        %v1269 = vsub.f32 %v390, %v1268
        %1270 = vmatmul.mubr.f32.gmra.mrb[0].mxu0 %v1269
        %v1271 = vpop.f32.mrb[0].mxu0
        %v1272 = vadd.f32 %v995, %v1271
        %v1273 = vpop.f32.mrb[0].mxu0
        %1274 = vmatprep.mubr.f32.mxu0 0.0
        %v1275 = vand.u32 %v393, 4294901760
        %v1276 = vsub.f32 %v393, %v1275
        %1277 = vmatmul.mubr.f32.gmra.mrb[0].mxu0 %v1276
        %v1278 = vpop.f32.mrb[0].mxu0
        %v1279 = vadd.f32 %v1001, %v1278
        %v1280 = vpop.f32.mrb[0].mxu0
        %1281 = vmatprep.mubr.f32.mxu0 0.0
        %v1282 = vand.u32 %v396, 4294901760
        %v1283 = vsub.f32 %v396, %v1282
        %1284 = vmatmul.mubr.f32.gmra.mrb[0].mxu0 %v1283
        %v1285 = vpop.f32.mrb[0].mxu0
        %v1286 = vadd.f32 %v1007, %v1285
        %v1287 = vpop.f32.mrb[0].mxu0
        %1288 = vmatprep.mubr.f32.mxu0 0.0
        %v1289 = vand.u32 %v399, 4294901760
        %v1290 = vsub.f32 %v399, %v1289
        %1291 = vmatmul.mubr.f32.gmra.mrb[0].mxu0 %v1290
        %v1292 = vpop.f32.mrb[0].mxu0
        %v1293 = vadd.f32 %v1013, %v1292
        %v1294 = vpop.f32.mrb[0].mxu0
        %1295 = vmatprep.mubr.f32.mxu0 0.0
        %v1296 = vand.u32 %v402, 4294901760
        %v1297 = vsub.f32 %v402, %v1296
        %1298 = vmatmul.mubr.f32.gmra.mrb[0].mxu0 %v1297
        %v1299 = vpop.f32.mrb[0].mxu0
        %v1300 = vadd.f32 %v1019, %v1299
        %v1301 = vpop.f32.mrb[0].mxu0
        %1302 = vmatprep.mubr.f32.mxu0 0.0
        %v1303 = vand.u32 %v405, 4294901760
        %v1304 = vsub.f32 %v405, %v1303
        %1305 = vmatmul.mubr.f32.gmra.mrb[0].mxu0 %v1304
        %v1306 = vpop.f32.mrb[0].mxu0
        %v1307 = vadd.f32 %v1025, %v1306
        %v1308 = vpop.f32.mrb[0].mxu0
        %1309 = vmatprep.mubr.f32.mxu0 0.0
        %v1310 = vand.u32 %v408, 4294901760
        %v1311 = vsub.f32 %v408, %v1310
        %1312 = vmatmul.mubr.f32.gmra.mrb[0].mxu0 %v1311
        %v1313 = vpop.f32.mrb[0].mxu0
        %v1314 = vadd.f32 %v1031, %v1313
        %v1315 = vpop.f32.mrb[0].mxu0
        %1316 = vmatprep.mubr.f32.mxu0 0.0
        %v1317 = vand.u32 %v411, 4294901760
        %v1318 = vsub.f32 %v411, %v1317
        %1319 = vmatmul.mubr.f32.gmra.mrb[0].mxu0 %v1318
        %v1320 = vpop.f32.mrb[0].mxu0
        %v1321 = vadd.f32 %v1037, %v1320
        %v1322 = vpop.f32.mrb[0].mxu0
        %1323 = vmatprep.mubr.f32.mxu0 0.0
        %v1324 = vand.u32 %v414, 4294901760
        %v1325 = vsub.f32 %v414, %v1324
        %1326 = vmatmul.mubr.f32.gmra.mrb[0].mxu0 %v1325
        %v1327 = vpop.f32.mrb[0].mxu0
        %v1328 = vadd.f32 %v1043, %v1327
        %v1329 = vpop.f32.mrb[0].mxu0
        %1330 = vmatprep.mubr.f32.mxu0 0.0
        %v1331 = vand.u32 %v417, 4294901760
        %v1332 = vsub.f32 %v417, %v1331
        %1333 = vmatmul.mubr.f32.gmra.mrb[0].mxu0 %v1332
        %v1334 = vpop.f32.mrb[0].mxu0
        %v1335 = vadd.f32 %v1049, %v1334
        %v1336 = vpop.f32.mrb[0].mxu0
        %1337 = vmatprep.mubr.f32.mxu0 0.0
        %v1338 = vand.u32 %v420, 4294901760
        %v1339 = vsub.f32 %v420, %v1338
        %1340 = vmatmul.mubr.f32.gmra.mrb[0].mxu0 %v1339
        %v1341 = vpop.f32.mrb[0].mxu0
        %v1342 = vadd.f32 %v1055, %v1341
        %v1343 = vpop.f32.mrb[0].mxu0
        %1344 = vmatprep.mubr.f32.mxu0 0.0
        %v1345 = vand.u32 %v423, 4294901760
        %v1346 = vsub.f32 %v423, %v1345
        %1347 = vmatmul.mubr.f32.gmra.mrb[0].mxu0 %v1346
        %v1348 = vpop.f32.mrb[0].mxu0
        %v1349 = vadd.f32 %v1061, %v1348
        %v1350 = vpop.f32.mrb[0].mxu0
        %1351 = vmatprep.mubr.f32.mxu0 0.0
        %v1352 = vand.u32 %v426, 4294901760
        %v1353 = vsub.f32 %v426, %v1352
        %1354 = vmatmul.mubr.f32.gmra.mrb[0].mxu0 %v1353
        %v1355 = vpop.f32.mrb[0].mxu0
        %v1356 = vadd.f32 %v1067, %v1355
        %v1357 = vpop.f32.mrb[0].mxu0
        %1358 = vmatprep.mubr.f32.mxu0 0.0
        %v1359 = vand.u32 %v429, 4294901760
        %v1360 = vsub.f32 %v429, %v1359
        %1361 = vmatmul.mubr.f32.gmra.mrb[0].mxu0 %v1360
        %v1362 = vpop.f32.mrb[0].mxu0
        %v1363 = vadd.f32 %v1073, %v1362
        %v1364 = vpop.f32.mrb[0].mxu0
        %1365 = vmatprep.mubr.f32.mxu0 0.0
        %v1366 = vand.u32 %v432, 4294901760
        %v1367 = vsub.f32 %v432, %v1366
        %1368 = vmatmul.mubr.f32.gmra.mrb[0].mxu0 %v1367
        %v1369 = vpop.f32.mrb[0].mxu0
        %v1370 = vadd.f32 %v1079, %v1369
        %v1371 = vpop.f32.mrb[0].mxu0
        %1372 = vmatprep.mubr.f32.mxu0 0.0
        %v1373 = vand.u32 %v435, 4294901760
        %v1374 = vsub.f32 %v435, %v1373
        %1375 = vmatmul.mubr.f32.gmra.mrb[0].mxu0 %v1374
        %v1376 = vpop.f32.mrb[0].mxu0
        %v1377 = vadd.f32 %v1085, %v1376
        %v1378 = vpop.f32.mrb[0].mxu0
        %1379 = vmatprep.mubr.f32.mxu0 0.0
        %v1380 = vand.u32 %v438, 4294901760
        %v1381 = vsub.f32 %v438, %v1380
        %1382 = vmatmul.mubr.f32.gmra.mrb[0].mxu0 %v1381
        %v1383 = vpop.f32.mrb[0].mxu0
        %v1384 = vadd.f32 %v1091, %v1383
        %v1385 = vpop.f32.mrb[0].mxu0
        %1386 = vmatprep.mubr.f32.mxu0 0.0
        %v1387 = vand.u32 %v441, 4294901760
        %v1388 = vsub.f32 %v441, %v1387
        %1389 = vmatmul.mubr.f32.gmra.mrb[0].mxu0 %v1388
        %v1390 = vpop.f32.mrb[0].mxu0
        %v1391 = vadd.f32 %v1097, %v1390
        %v1392 = vpop.f32.mrb[0].mxu0
        %1393 = vmatprep.mubr.f32.mxu0 0.0
        %v1394 = vand.u32 %v444, 4294901760
        %v1395 = vsub.f32 %v444, %v1394
        %1396 = vmatmul.mubr.f32.gmra.mrb[0].mxu0 %v1395
        %v1397 = vpop.f32.mrb[0].mxu0
        %v1398 = vadd.f32 %v1103, %v1397
        %v1399 = vpop.f32.mrb[0].mxu0
        %1400 = vmatprep.mubr.f32.mxu0 0.0
        %v1401 = vand.u32 %v447, 4294901760
        %v1402 = vsub.f32 %v447, %v1401
        %1403 = vmatmul.mubr.f32.gmra.mrb[0].mxu0 %v1402
        %v1404 = vpop.f32.mrb[0].mxu0
        %v1405 = vadd.f32 %v1109, %v1404
        %v1406 = vpop.f32.mrb[0].mxu0
        %1407 = vmatprep.mubr.f32.mxu0 0.0
        %v1408 = vand.u32 %v450, 4294901760
        %v1409 = vsub.f32 %v450, %v1408
        %1410 = vmatmul.mubr.f32.gmra.mrb[0].mxu0 %v1409
        %v1411 = vpop.f32.mrb[0].mxu0
        %v1412 = vadd.f32 %v1115, %v1411
        %v1413 = vpop.f32.mrb[0].mxu0
        %1414 = vmatprep.mubr.f32.mxu0 0.0
        %v1415 = vand.u32 %v453, 4294901760
        %v1416 = vsub.f32 %v453, %v1415
        %1417 = vmatmul.mubr.f32.gmra.mrb[0].mxu0 %v1416
        %v1418 = vpop.f32.mrb[0].mxu0
        %v1419 = vadd.f32 %v1121, %v1418
        %v1420 = vpop.f32.mrb[0].mxu0
        %1421 = vmatprep.mubr.f32.mxu0 0.0
        %v1422 = vand.u32 %v456, 4294901760
        %v1423 = vsub.f32 %v456, %v1422
        %1424 = vmatmul.mubr.f32.gmra.mrb[0].mxu0 %v1423
        %v1425 = vpop.f32.mrb[0].mxu0
        %v1426 = vadd.f32 %v1127, %v1425
        %v1427 = vpop.f32.mrb[0].mxu0
        %1428 = vmatprep.mubr.f32.mxu0 0.0
        %v1429 = vand.u32 %v459, 4294901760
        %v1430 = vsub.f32 %v459, %v1429
        %1431 = vmatmul.mubr.f32.gmra.mrb[0].mxu0 %v1430
        %v1432 = vpop.f32.mrb[0].mxu0
        %v1433 = vadd.f32 %v1133, %v1432
        %v1434 = vpop.f32.mrb[0].mxu0
        %1435 = vmatprep.mubr.f32.mxu0 0.0
        %v1436 = vand.u32 %v462, 4294901760
        %v1437 = vsub.f32 %v462, %v1436
        %1438 = vmatmul.mubr.f32.gmra.mrb[0].mxu0 %v1437
        %v1439 = vpop.f32.mrb[0].mxu0
        %v1440 = vadd.f32 %v1139, %v1439
        %v1441 = vpop.f32.mrb[0].mxu0
        %1442 = vmatprep.mubr.f32.mxu0 0.0
        %v1443 = vand.u32 %v465, 4294901760
        %v1444 = vsub.f32 %v465, %v1443
        %1445 = vmatmul.mubr.f32.gmra.mrb[0].mxu0 %v1444
        %v1446 = vpop.f32.mrb[0].mxu0
        %v1447 = vadd.f32 %v1145, %v1446
        %v1448 = vpop.f32.mrb[0].mxu0
        %1449 = vmatprep.mubr.f32.mxu0 0.0
        %v1450 = vand.u32 %v468, 4294901760
        %v1451 = vsub.f32 %v468, %v1450
        %1452 = vmatmul.mubr.f32.gmra.mrb[0].mxu0 %v1451
        %v1453 = vpop.f32.mrb[0].mxu0
        %v1454 = vadd.f32 %v1151, %v1453
        %v1455 = vpop.f32.mrb[0].mxu0
        %1456 = vmatprep.mubr.f32.mxu0 0.0
        %v1457 = vand.u32 %v471, 4294901760
        %v1458 = vsub.f32 %v471, %v1457
        %1459 = vmatmul.mubr.f32.gmra.mrb[0].mxu0 %v1458
        %v1460 = vpop.f32.mrb[0].mxu0
        %v1461 = vadd.f32 %v1157, %v1460
        %v1462 = vpop.f32.mrb[0].mxu0
        %1463 = vmatprep.mubr.f32.mxu0 0.0
        %v1464 = vand.u32 %v474, 4294901760
        %v1465 = vsub.f32 %v474, %v1464
        %1466 = vmatmul.mubr.f32.gmra.mrb[0].mxu0 %v1465
        %v1467 = vpop.f32.mrb[0].mxu0
        %v1468 = vadd.f32 %v1163, %v1467
        %v1469 = vpop.f32.mrb[0].mxu0
        %1470 = vdwg.mxu0
        %1471 = vmatprep.subr.mxu0 0.0
        %v1472 = vand.u32 %v371, 4294901760
        %1473 = vmatpush1.msra.mxu0 %v1472
        %1474 = vmatprep.subr.mxu0 0.0
        %v1475 = vand.u32 %v372, 4294901760
        %1476 = vmatpush1.msra.mxu0 %v1475
        %1477 = vmatprep.subr.mxu0 0.0
        %v1478 = vand.u32 %v373, 4294901760
        %1479 = vmatpush1.msra.mxu0 %v1478
        %1480 = vmatprep.subr.mxu0 0.0
        %v1481 = vand.u32 %v374, 4294901760
        %1482 = vmatpush1.msra.mxu0 %v1481
        %1483 = vmatprep.subr.mxu0 0.0
        %v1484 = vand.u32 %v375, 4294901760
        %1485 = vmatpush1.msra.mxu0 %v1484
        %1486 = vmatprep.subr.mxu0 0.0
        %v1487 = vand.u32 %v376, 4294901760
        %1488 = vmatpush1.msra.mxu0 %v1487
        %1489 = vmatprep.subr.mxu0 0.0
        %v1490 = vand.u32 %v377, 4294901760
        %1491 = vmatpush1.msra.mxu0 %v1490
        %1492 = vmatprep.subr.mxu0 0.0
        %v1493 = vand.u32 %v378, 4294901760
        %1494 = vmatpush1.msra.mxu0 %v1493
        %1495 = vmatprep.subr.mxu0 0.0
        %1496 = vmatpush1.msra.mxu0 0.0
        %1497 = vmatprep.subr.mxu0 0.0
        %1498 = vmatpush1.msra.mxu0 0.0
        %1499 = vmatprep.subr.mxu0 0.0
        %1500 = vmatpush1.msra.mxu0 0.0
        %1501 = vmatprep.subr.mxu0 0.0
        %1502 = vmatpush1.msra.mxu0 0.0
        %1503 = vmatprep.subr.mxu0 0.0
        %1504 = vmatpush1.msra.mxu0 0.0
        %1505 = vmatprep.subr.mxu0 0.0
        %1506 = vmatpush1.msra.mxu0 0.0
        %1507 = vmatprep.subr.mxu0 0.0
        %1508 = vmatpush1.msra.mxu0 0.0
        %1509 = vmatprep.subr.mxu0 0.0
        %1510 = vmatpush1.msra.mxu0 0.0
        %1511 = vmatprep.subr.mxu0 0.0
        %1512 = vmatpush1.msra.mxu0 0.0
        %1513 = vmatprep.subr.mxu0 0.0
        %1514 = vmatpush1.msra.mxu0 0.0
        %1515 = vmatprep.subr.mxu0 0.0
        %1516 = vmatpush1.msra.mxu0 0.0
        %1517 = vmatprep.subr.mxu0 0.0
        %1518 = vmatpush1.msra.mxu0 0.0
        %1519 = vmatprep.subr.mxu0 0.0
        %1520 = vmatpush1.msra.mxu0 0.0
        %1521 = vmatprep.subr.mxu0 0.0
        %1522 = vmatpush1.msra.mxu0 0.0
        %1523 = vmatprep.subr.mxu0 0.0
        %1524 = vmatpush1.msra.mxu0 0.0
        %1525 = vmatprep.subr.mxu0 0.0
        %1526 = vmatpush1.msra.mxu0 0.0
        %1527 = vmatprep.subr.mxu0 0.0
        %1528 = vmatpush1.msra.mxu0 0.0
        %1529 = vmatprep.subr.mxu0 0.0
        %1530 = vmatpush1.msra.mxu0 0.0
        %1531 = vmatprep.subr.mxu0 0.0
        %1532 = vmatpush1.msra.mxu0 0.0
        %1533 = vmatprep.subr.mxu0 0.0
        %1534 = vmatpush1.msra.mxu0 0.0
        %1535 = vmatprep.subr.mxu0 0.0
        %1536 = vmatpush1.msra.mxu0 0.0
        %1537 = vmatprep.subr.mxu0 0.0
        %1538 = vmatpush1.msra.mxu0 0.0
        %1539 = vmatprep.subr.mxu0 0.0
        %1540 = vmatpush1.msra.mxu0 0.0
        %1541 = vmatprep.subr.mxu0 0.0
        %1542 = vmatpush1.msra.mxu0 0.0
        %1543 = vmatprep.mubr.f32.mxu0 0.0
        %v1544 = vand.u32 %v381, 4294901760
        %v1545 = vsub.f32 %v381, %v1544
        %v1546 = vand.u32 %v1545, 4294901760
        %1547 = vmatmul.mubr.f32.gmra.mrb[0].mxu0 %v1546
        %v1548 = vpop.f32.mrb[0].mxu0
        %v1549 = vadd.f32 %v1251, %v1548
        %v1550 = vpop.f32.mrb[0].mxu0
        %1551 = vmatprep.mubr.f32.mxu0 0.0
        %v1552 = vand.u32 %v384, 4294901760
        %v1553 = vsub.f32 %v384, %v1552
        %v1554 = vand.u32 %v1553, 4294901760
        %1555 = vmatmul.mubr.f32.gmra.mrb[0].mxu0 %v1554
        %v1556 = vpop.f32.mrb[0].mxu0
        %v1557 = vadd.f32 %v1258, %v1556
        %v1558 = vpop.f32.mrb[0].mxu0
        %1559 = vmatprep.mubr.f32.mxu0 0.0
        %v1560 = vand.u32 %v387, 4294901760
        %v1561 = vsub.f32 %v387, %v1560
        %v1562 = vand.u32 %v1561, 4294901760
        %1563 = vmatmul.mubr.f32.gmra.mrb[0].mxu0 %v1562
        %v1564 = vpop.f32.mrb[0].mxu0
        %v1565 = vadd.f32 %v1265, %v1564
        %v1566 = vpop.f32.mrb[0].mxu0
        %1567 = vmatprep.mubr.f32.mxu0 0.0
        %v1568 = vand.u32 %v390, 4294901760
        %v1569 = vsub.f32 %v390, %v1568
        %v1570 = vand.u32 %v1569, 4294901760
        %1571 = vmatmul.mubr.f32.gmra.mrb[0].mxu0 %v1570
        %v1572 = vpop.f32.mrb[0].mxu0
        %v1573 = vadd.f32 %v1272, %v1572
        %v1574 = vpop.f32.mrb[0].mxu0
        %1575 = vmatprep.mubr.f32.mxu0 0.0
        %v1576 = vand.u32 %v393, 4294901760
        %v1577 = vsub.f32 %v393, %v1576
        %v1578 = vand.u32 %v1577, 4294901760
        %1579 = vmatmul.mubr.f32.gmra.mrb[0].mxu0 %v1578
        %v1580 = vpop.f32.mrb[0].mxu0
        %v1581 = vadd.f32 %v1279, %v1580
        %v1582 = vpop.f32.mrb[0].mxu0
        %1583 = vmatprep.mubr.f32.mxu0 0.0
        %v1584 = vand.u32 %v396, 4294901760
        %v1585 = vsub.f32 %v396, %v1584
        %v1586 = vand.u32 %v1585, 4294901760
        %1587 = vmatmul.mubr.f32.gmra.mrb[0].mxu0 %v1586
        %v1588 = vpop.f32.mrb[0].mxu0
        %v1589 = vadd.f32 %v1286, %v1588
        %v1590 = vpop.f32.mrb[0].mxu0
        %1591 = vmatprep.mubr.f32.mxu0 0.0
        %v1592 = vand.u32 %v399, 4294901760
        %v1593 = vsub.f32 %v399, %v1592
        %v1594 = vand.u32 %v1593, 4294901760
        %1595 = vmatmul.mubr.f32.gmra.mrb[0].mxu0 %v1594
        %v1596 = vpop.f32.mrb[0].mxu0
        %v1597 = vadd.f32 %v1293, %v1596
        %v1598 = vpop.f32.mrb[0].mxu0
        %1599 = vmatprep.mubr.f32.mxu0 0.0
        %v1600 = vand.u32 %v402, 4294901760
        %v1601 = vsub.f32 %v402, %v1600
        %v1602 = vand.u32 %v1601, 4294901760
        %1603 = vmatmul.mubr.f32.gmra.mrb[0].mxu0 %v1602
        %v1604 = vpop.f32.mrb[0].mxu0
        %v1605 = vadd.f32 %v1300, %v1604
        %v1606 = vpop.f32.mrb[0].mxu0
        %1607 = vmatprep.mubr.f32.mxu0 0.0
        %v1608 = vand.u32 %v405, 4294901760
        %v1609 = vsub.f32 %v405, %v1608
        %v1610 = vand.u32 %v1609, 4294901760
        %1611 = vmatmul.mubr.f32.gmra.mrb[0].mxu0 %v1610
        %v1612 = vpop.f32.mrb[0].mxu0
        %v1613 = vadd.f32 %v1307, %v1612
        %v1614 = vpop.f32.mrb[0].mxu0
        %1615 = vmatprep.mubr.f32.mxu0 0.0
        %v1616 = vand.u32 %v408, 4294901760
        %v1617 = vsub.f32 %v408, %v1616
        %v1618 = vand.u32 %v1617, 4294901760
        %1619 = vmatmul.mubr.f32.gmra.mrb[0].mxu0 %v1618
        %v1620 = vpop.f32.mrb[0].mxu0
        %v1621 = vadd.f32 %v1314, %v1620
        %v1622 = vpop.f32.mrb[0].mxu0
        %1623 = vmatprep.mubr.f32.mxu0 0.0
        %v1624 = vand.u32 %v411, 4294901760
        %v1625 = vsub.f32 %v411, %v1624
        %v1626 = vand.u32 %v1625, 4294901760
        %1627 = vmatmul.mubr.f32.gmra.mrb[0].mxu0 %v1626
        %v1628 = vpop.f32.mrb[0].mxu0
        %v1629 = vadd.f32 %v1321, %v1628
        %v1630 = vpop.f32.mrb[0].mxu0
        %1631 = vmatprep.mubr.f32.mxu0 0.0
        %v1632 = vand.u32 %v414, 4294901760
        %v1633 = vsub.f32 %v414, %v1632
        %v1634 = vand.u32 %v1633, 4294901760
        %1635 = vmatmul.mubr.f32.gmra.mrb[0].mxu0 %v1634
        %v1636 = vpop.f32.mrb[0].mxu0
        %v1637 = vadd.f32 %v1328, %v1636
        %v1638 = vpop.f32.mrb[0].mxu0
        %1639 = vmatprep.mubr.f32.mxu0 0.0
        %v1640 = vand.u32 %v417, 4294901760
        %v1641 = vsub.f32 %v417, %v1640
        %v1642 = vand.u32 %v1641, 4294901760
        %1643 = vmatmul.mubr.f32.gmra.mrb[0].mxu0 %v1642
        %v1644 = vpop.f32.mrb[0].mxu0
        %v1645 = vadd.f32 %v1335, %v1644
        %v1646 = vpop.f32.mrb[0].mxu0
        %1647 = vmatprep.mubr.f32.mxu0 0.0
        %v1648 = vand.u32 %v420, 4294901760
        %v1649 = vsub.f32 %v420, %v1648
        %v1650 = vand.u32 %v1649, 4294901760
        %1651 = vmatmul.mubr.f32.gmra.mrb[0].mxu0 %v1650
        %v1652 = vpop.f32.mrb[0].mxu0
        %v1653 = vadd.f32 %v1342, %v1652
        %v1654 = vpop.f32.mrb[0].mxu0
        %1655 = vmatprep.mubr.f32.mxu0 0.0
        %v1656 = vand.u32 %v423, 4294901760
        %v1657 = vsub.f32 %v423, %v1656
        %v1658 = vand.u32 %v1657, 4294901760
        %1659 = vmatmul.mubr.f32.gmra.mrb[0].mxu0 %v1658
        %v1660 = vpop.f32.mrb[0].mxu0
        %v1661 = vadd.f32 %v1349, %v1660
        %v1662 = vpop.f32.mrb[0].mxu0
        %1663 = vmatprep.mubr.f32.mxu0 0.0
        %v1664 = vand.u32 %v426, 4294901760
        %v1665 = vsub.f32 %v426, %v1664
        %v1666 = vand.u32 %v1665, 4294901760
        %1667 = vmatmul.mubr.f32.gmra.mrb[0].mxu0 %v1666
        %v1668 = vpop.f32.mrb[0].mxu0
        %v1669 = vadd.f32 %v1356, %v1668
        %v1670 = vpop.f32.mrb[0].mxu0
        %1671 = vmatprep.mubr.f32.mxu0 0.0
        %v1672 = vand.u32 %v429, 4294901760
        %v1673 = vsub.f32 %v429, %v1672
        %v1674 = vand.u32 %v1673, 4294901760
        %1675 = vmatmul.mubr.f32.gmra.mrb[0].mxu0 %v1674
        %v1676 = vpop.f32.mrb[0].mxu0
        %v1677 = vadd.f32 %v1363, %v1676
        %v1678 = vpop.f32.mrb[0].mxu0
        %1679 = vmatprep.mubr.f32.mxu0 0.0
        %v1680 = vand.u32 %v432, 4294901760
        %v1681 = vsub.f32 %v432, %v1680
        %v1682 = vand.u32 %v1681, 4294901760
        %1683 = vmatmul.mubr.f32.gmra.mrb[0].mxu0 %v1682
        %v1684 = vpop.f32.mrb[0].mxu0
        %v1685 = vadd.f32 %v1370, %v1684
        %v1686 = vpop.f32.mrb[0].mxu0
        %1687 = vmatprep.mubr.f32.mxu0 0.0
        %v1688 = vand.u32 %v435, 4294901760
        %v1689 = vsub.f32 %v435, %v1688
        %v1690 = vand.u32 %v1689, 4294901760
        %1691 = vmatmul.mubr.f32.gmra.mrb[0].mxu0 %v1690
        %v1692 = vpop.f32.mrb[0].mxu0
        %v1693 = vadd.f32 %v1377, %v1692
        %v1694 = vpop.f32.mrb[0].mxu0
        %1695 = vmatprep.mubr.f32.mxu0 0.0
        %v1696 = vand.u32 %v438, 4294901760
        %v1697 = vsub.f32 %v438, %v1696
        %v1698 = vand.u32 %v1697, 4294901760
        %1699 = vmatmul.mubr.f32.gmra.mrb[0].mxu0 %v1698
        %v1700 = vpop.f32.mrb[0].mxu0
        %v1701 = vadd.f32 %v1384, %v1700
        %v1702 = vpop.f32.mrb[0].mxu0
        %1703 = vmatprep.mubr.f32.mxu0 0.0
        %v1704 = vand.u32 %v441, 4294901760
        %v1705 = vsub.f32 %v441, %v1704
        %v1706 = vand.u32 %v1705, 4294901760
        %1707 = vmatmul.mubr.f32.gmra.mrb[0].mxu0 %v1706
        %v1708 = vpop.f32.mrb[0].mxu0
        %v1709 = vadd.f32 %v1391, %v1708
        %v1710 = vpop.f32.mrb[0].mxu0
        %1711 = vmatprep.mubr.f32.mxu0 0.0
        %v1712 = vand.u32 %v444, 4294901760
        %v1713 = vsub.f32 %v444, %v1712
        %v1714 = vand.u32 %v1713, 4294901760
        %1715 = vmatmul.mubr.f32.gmra.mrb[0].mxu0 %v1714
        %v1716 = vpop.f32.mrb[0].mxu0
        %v1717 = vadd.f32 %v1398, %v1716
        %v1718 = vpop.f32.mrb[0].mxu0
        %1719 = vmatprep.mubr.f32.mxu0 0.0
        %v1720 = vand.u32 %v447, 4294901760
        %v1721 = vsub.f32 %v447, %v1720
        %v1722 = vand.u32 %v1721, 4294901760
        %1723 = vmatmul.mubr.f32.gmra.mrb[0].mxu0 %v1722
        %v1724 = vpop.f32.mrb[0].mxu0
        %v1725 = vadd.f32 %v1405, %v1724
        %v1726 = vpop.f32.mrb[0].mxu0
        %1727 = vmatprep.mubr.f32.mxu0 0.0
        %v1728 = vand.u32 %v450, 4294901760
        %v1729 = vsub.f32 %v450, %v1728
        %v1730 = vand.u32 %v1729, 4294901760
        %1731 = vmatmul.mubr.f32.gmra.mrb[0].mxu0 %v1730
        %v1732 = vpop.f32.mrb[0].mxu0
        %v1733 = vadd.f32 %v1412, %v1732
        %v1734 = vpop.f32.mrb[0].mxu0
        %1735 = vmatprep.mubr.f32.mxu0 0.0
        %v1736 = vand.u32 %v453, 4294901760
        %v1737 = vsub.f32 %v453, %v1736
        %v1738 = vand.u32 %v1737, 4294901760
        %1739 = vmatmul.mubr.f32.gmra.mrb[0].mxu0 %v1738
        %v1740 = vpop.f32.mrb[0].mxu0
        %v1741 = vadd.f32 %v1419, %v1740
        %v1742 = vpop.f32.mrb[0].mxu0
        %1743 = vmatprep.mubr.f32.mxu0 0.0
        %v1744 = vand.u32 %v456, 4294901760
        %v1745 = vsub.f32 %v456, %v1744
        %v1746 = vand.u32 %v1745, 4294901760
        %1747 = vmatmul.mubr.f32.gmra.mrb[0].mxu0 %v1746
        %v1748 = vpop.f32.mrb[0].mxu0
        %v1749 = vadd.f32 %v1426, %v1748
        %v1750 = vpop.f32.mrb[0].mxu0
        %1751 = vmatprep.mubr.f32.mxu0 0.0
        %v1752 = vand.u32 %v459, 4294901760
        %v1753 = vsub.f32 %v459, %v1752
        %v1754 = vand.u32 %v1753, 4294901760
        %1755 = vmatmul.mubr.f32.gmra.mrb[0].mxu0 %v1754
        %v1756 = vpop.f32.mrb[0].mxu0
        %v1757 = vadd.f32 %v1433, %v1756
        %v1758 = vpop.f32.mrb[0].mxu0
        %1759 = vmatprep.mubr.f32.mxu0 0.0
        %v1760 = vand.u32 %v462, 4294901760
        %v1761 = vsub.f32 %v462, %v1760
        %v1762 = vand.u32 %v1761, 4294901760
        %1763 = vmatmul.mubr.f32.gmra.mrb[0].mxu0 %v1762
        %v1764 = vpop.f32.mrb[0].mxu0
        %v1765 = vadd.f32 %v1440, %v1764
        %v1766 = vpop.f32.mrb[0].mxu0
        %1767 = vmatprep.mubr.f32.mxu0 0.0
        %v1768 = vand.u32 %v465, 4294901760
        %v1769 = vsub.f32 %v465, %v1768
        %v1770 = vand.u32 %v1769, 4294901760
        %1771 = vmatmul.mubr.f32.gmra.mrb[0].mxu0 %v1770
        %v1772 = vpop.f32.mrb[0].mxu0
        %v1773 = vadd.f32 %v1447, %v1772
        %v1774 = vpop.f32.mrb[0].mxu0
        %1775 = vmatprep.mubr.f32.mxu0 0.0
        %v1776 = vand.u32 %v468, 4294901760
        %v1777 = vsub.f32 %v468, %v1776
        %v1778 = vand.u32 %v1777, 4294901760
        %1779 = vmatmul.mubr.f32.gmra.mrb[0].mxu0 %v1778
        %v1780 = vpop.f32.mrb[0].mxu0
        %v1781 = vadd.f32 %v1454, %v1780
        %v1782 = vpop.f32.mrb[0].mxu0
        %1783 = vmatprep.mubr.f32.mxu0 0.0
        %v1784 = vand.u32 %v471, 4294901760
        %v1785 = vsub.f32 %v471, %v1784
        %v1786 = vand.u32 %v1785, 4294901760
        %1787 = vmatmul.mubr.f32.gmra.mrb[0].mxu0 %v1786
        %v1788 = vpop.f32.mrb[0].mxu0
        %v1789 = vadd.f32 %v1461, %v1788
        %v1790 = vpop.f32.mrb[0].mxu0
        %1791 = vmatprep.mubr.f32.mxu0 0.0
        %v1792 = vand.u32 %v474, 4294901760
        %v1793 = vsub.f32 %v474, %v1792
        %v1794 = vand.u32 %v1793, 4294901760
        %1795 = vmatmul.mubr.f32.gmra.mrb[0].mxu0 %v1794
        %v1796 = vpop.f32.mrb[0].mxu0
        %v1797 = vadd.f32 %v1468, %v1796
        %v1798 = vpop.f32.mrb[0].mxu0
        %1799 = vdwg.mxu0
        %1800 = vmatprep.subr.mxu0 0.0
        %v1801 = vand.u32 %v371, 4294901760
        %v1802 = vsub.f32 %v371, %v1801
        %v1803 = vand.u32 %v1802, 4294901760
        %1804 = vmatpush1.msra.mxu0 %v1803
        %1805 = vmatprep.subr.mxu0 0.0
        %v1806 = vand.u32 %v372, 4294901760
        %v1807 = vsub.f32 %v372, %v1806
        %v1808 = vand.u32 %v1807, 4294901760
        %1809 = vmatpush1.msra.mxu0 %v1808
        %1810 = vmatprep.subr.mxu0 0.0
        %v1811 = vand.u32 %v373, 4294901760
        %v1812 = vsub.f32 %v373, %v1811
        %v1813 = vand.u32 %v1812, 4294901760
        %1814 = vmatpush1.msra.mxu0 %v1813
        %1815 = vmatprep.subr.mxu0 0.0
        %v1816 = vand.u32 %v374, 4294901760
        %v1817 = vsub.f32 %v374, %v1816
        %v1818 = vand.u32 %v1817, 4294901760
        %1819 = vmatpush1.msra.mxu0 %v1818
        %1820 = vmatprep.subr.mxu0 0.0
        %v1821 = vand.u32 %v375, 4294901760
        %v1822 = vsub.f32 %v375, %v1821
        %v1823 = vand.u32 %v1822, 4294901760
        %1824 = vmatpush1.msra.mxu0 %v1823
        %1825 = vmatprep.subr.mxu0 0.0
        %v1826 = vand.u32 %v376, 4294901760
        %v1827 = vsub.f32 %v376, %v1826
        %v1828 = vand.u32 %v1827, 4294901760
        %1829 = vmatpush1.msra.mxu0 %v1828
        %1830 = vmatprep.subr.mxu0 0.0
        %v1831 = vand.u32 %v377, 4294901760
        %v1832 = vsub.f32 %v377, %v1831
        %v1833 = vand.u32 %v1832, 4294901760
        %1834 = vmatpush1.msra.mxu0 %v1833
        %1835 = vmatprep.subr.mxu0 0.0
        %v1836 = vand.u32 %v378, 4294901760
        %v1837 = vsub.f32 %v378, %v1836
        %v1838 = vand.u32 %v1837, 4294901760
        %1839 = vmatpush1.msra.mxu0 %v1838
        %1840 = vmatprep.subr.mxu0 0.0
        %1841 = vmatpush1.msra.mxu0 0.0
        %1842 = vmatprep.subr.mxu0 0.0
        %1843 = vmatpush1.msra.mxu0 0.0
        %1844 = vmatprep.subr.mxu0 0.0
        %1845 = vmatpush1.msra.mxu0 0.0
        %1846 = vmatprep.subr.mxu0 0.0
        %1847 = vmatpush1.msra.mxu0 0.0
        %1848 = vmatprep.subr.mxu0 0.0
        %1849 = vmatpush1.msra.mxu0 0.0
        %1850 = vmatprep.subr.mxu0 0.0
        %1851 = vmatpush1.msra.mxu0 0.0
        %1852 = vmatprep.subr.mxu0 0.0
        %1853 = vmatpush1.msra.mxu0 0.0
        %1854 = vmatprep.subr.mxu0 0.0
        %1855 = vmatpush1.msra.mxu0 0.0
        %1856 = vmatprep.subr.mxu0 0.0
        %1857 = vmatpush1.msra.mxu0 0.0
        %1858 = vmatprep.subr.mxu0 0.0
        %1859 = vmatpush1.msra.mxu0 0.0
        %1860 = vmatprep.subr.mxu0 0.0
        %1861 = vmatpush1.msra.mxu0 0.0
        %1862 = vmatprep.subr.mxu0 0.0
        %1863 = vmatpush1.msra.mxu0 0.0
        %1864 = vmatprep.subr.mxu0 0.0
        %1865 = vmatpush1.msra.mxu0 0.0
        %1866 = vmatprep.subr.mxu0 0.0
        %1867 = vmatpush1.msra.mxu0 0.0
        %1868 = vmatprep.subr.mxu0 0.0
        %1869 = vmatpush1.msra.mxu0 0.0
        %1870 = vmatprep.subr.mxu0 0.0
        %1871 = vmatpush1.msra.mxu0 0.0
        %1872 = vmatprep.subr.mxu0 0.0
        %1873 = vmatpush1.msra.mxu0 0.0
        %1874 = vmatprep.subr.mxu0 0.0
        %1875 = vmatpush1.msra.mxu0 0.0
        %1876 = vmatprep.subr.mxu0 0.0
        %1877 = vmatpush1.msra.mxu0 0.0
        %1878 = vmatprep.subr.mxu0 0.0
        %1879 = vmatpush1.msra.mxu0 0.0
        %1880 = vmatprep.subr.mxu0 0.0
        %1881 = vmatpush1.msra.mxu0 0.0
        %1882 = vmatprep.subr.mxu0 0.0
        %1883 = vmatpush1.msra.mxu0 0.0
        %1884 = vmatprep.subr.mxu0 0.0
        %1885 = vmatpush1.msra.mxu0 0.0
        %1886 = vmatprep.subr.mxu0 0.0
        %1887 = vmatpush1.msra.mxu0 0.0
        %1888 = vmatprep.mubr.f32.mxu0 0.0
        %v1889 = vand.u32 %v381, 4294901760
        %1890 = vmatmul.mubr.f32.gmra.mrb[0].mxu0 %v1889
        %v1891 = vpop.f32.mrb[0].mxu0
        %v1892 = vadd.f32 %v1549, %v1891
        %v1893 = vpop.f32.mrb[0].mxu0
        %1894 = vmatprep.mubr.f32.mxu0 0.0
        %v1895 = vand.u32 %v384, 4294901760
        %1896 = vmatmul.mubr.f32.gmra.mrb[0].mxu0 %v1895
        %v1897 = vpop.f32.mrb[0].mxu0
        %v1898 = vadd.f32 %v1557, %v1897
        %v1899 = vpop.f32.mrb[0].mxu0
        %1900 = vmatprep.mubr.f32.mxu0 0.0
        %v1901 = vand.u32 %v387, 4294901760
        %1902 = vmatmul.mubr.f32.gmra.mrb[0].mxu0 %v1901
        %v1903 = vpop.f32.mrb[0].mxu0
        %v1904 = vadd.f32 %v1565, %v1903
        %v1905 = vpop.f32.mrb[0].mxu0
        %1906 = vmatprep.mubr.f32.mxu0 0.0
        %v1907 = vand.u32 %v390, 4294901760
        %1908 = vmatmul.mubr.f32.gmra.mrb[0].mxu0 %v1907
        %v1909 = vpop.f32.mrb[0].mxu0
        %v1910 = vadd.f32 %v1573, %v1909
        %v1911 = vpop.f32.mrb[0].mxu0
        %1912 = vmatprep.mubr.f32.mxu0 0.0
        %v1913 = vand.u32 %v393, 4294901760
        %1914 = vmatmul.mubr.f32.gmra.mrb[0].mxu0 %v1913
        %v1915 = vpop.f32.mrb[0].mxu0
        %v1916 = vadd.f32 %v1581, %v1915
        %v1917 = vpop.f32.mrb[0].mxu0
        %1918 = vmatprep.mubr.f32.mxu0 0.0
        %v1919 = vand.u32 %v396, 4294901760
        %1920 = vmatmul.mubr.f32.gmra.mrb[0].mxu0 %v1919
        %v1921 = vpop.f32.mrb[0].mxu0
        %v1922 = vadd.f32 %v1589, %v1921
        %v1923 = vpop.f32.mrb[0].mxu0
        %1924 = vmatprep.mubr.f32.mxu0 0.0
        %v1925 = vand.u32 %v399, 4294901760
        %1926 = vmatmul.mubr.f32.gmra.mrb[0].mxu0 %v1925
        %v1927 = vpop.f32.mrb[0].mxu0
        %v1928 = vadd.f32 %v1597, %v1927
        %v1929 = vpop.f32.mrb[0].mxu0
        %1930 = vmatprep.mubr.f32.mxu0 0.0
        %v1931 = vand.u32 %v402, 4294901760
        %1932 = vmatmul.mubr.f32.gmra.mrb[0].mxu0 %v1931
        %v1933 = vpop.f32.mrb[0].mxu0
        %v1934 = vadd.f32 %v1605, %v1933
        %v1935 = vpop.f32.mrb[0].mxu0
        %1936 = vmatprep.mubr.f32.mxu0 0.0
        %v1937 = vand.u32 %v405, 4294901760
        %1938 = vmatmul.mubr.f32.gmra.mrb[0].mxu0 %v1937
        %v1939 = vpop.f32.mrb[0].mxu0
        %v1940 = vadd.f32 %v1613, %v1939
        %v1941 = vpop.f32.mrb[0].mxu0
        %1942 = vmatprep.mubr.f32.mxu0 0.0
        %v1943 = vand.u32 %v408, 4294901760
        %1944 = vmatmul.mubr.f32.gmra.mrb[0].mxu0 %v1943
        %v1945 = vpop.f32.mrb[0].mxu0
        %v1946 = vadd.f32 %v1621, %v1945
        %v1947 = vpop.f32.mrb[0].mxu0
        %1948 = vmatprep.mubr.f32.mxu0 0.0
        %v1949 = vand.u32 %v411, 4294901760
        %1950 = vmatmul.mubr.f32.gmra.mrb[0].mxu0 %v1949
        %v1951 = vpop.f32.mrb[0].mxu0
        %v1952 = vadd.f32 %v1629, %v1951
        %v1953 = vpop.f32.mrb[0].mxu0
        %1954 = vmatprep.mubr.f32.mxu0 0.0
        %v1955 = vand.u32 %v414, 4294901760
        %1956 = vmatmul.mubr.f32.gmra.mrb[0].mxu0 %v1955
        %v1957 = vpop.f32.mrb[0].mxu0
        %v1958 = vadd.f32 %v1637, %v1957
        %v1959 = vpop.f32.mrb[0].mxu0
        %1960 = vmatprep.mubr.f32.mxu0 0.0
        %v1961 = vand.u32 %v417, 4294901760
        %1962 = vmatmul.mubr.f32.gmra.mrb[0].mxu0 %v1961
        %v1963 = vpop.f32.mrb[0].mxu0
        %v1964 = vadd.f32 %v1645, %v1963
        %v1965 = vpop.f32.mrb[0].mxu0
        %1966 = vmatprep.mubr.f32.mxu0 0.0
        %v1967 = vand.u32 %v420, 4294901760
        %1968 = vmatmul.mubr.f32.gmra.mrb[0].mxu0 %v1967
        %v1969 = vpop.f32.mrb[0].mxu0
        %v1970 = vadd.f32 %v1653, %v1969
        %v1971 = vpop.f32.mrb[0].mxu0
        %1972 = vmatprep.mubr.f32.mxu0 0.0
        %v1973 = vand.u32 %v423, 4294901760
        %1974 = vmatmul.mubr.f32.gmra.mrb[0].mxu0 %v1973
        %v1975 = vpop.f32.mrb[0].mxu0
        %v1976 = vadd.f32 %v1661, %v1975
        %v1977 = vpop.f32.mrb[0].mxu0
        %1978 = vmatprep.mubr.f32.mxu0 0.0
        %v1979 = vand.u32 %v426, 4294901760
        %1980 = vmatmul.mubr.f32.gmra.mrb[0].mxu0 %v1979
        %v1981 = vpop.f32.mrb[0].mxu0
        %v1982 = vadd.f32 %v1669, %v1981
        %v1983 = vpop.f32.mrb[0].mxu0
        %1984 = vmatprep.mubr.f32.mxu0 0.0
        %v1985 = vand.u32 %v429, 4294901760
        %1986 = vmatmul.mubr.f32.gmra.mrb[0].mxu0 %v1985
        %v1987 = vpop.f32.mrb[0].mxu0
        %v1988 = vadd.f32 %v1677, %v1987
        %v1989 = vpop.f32.mrb[0].mxu0
        %1990 = vmatprep.mubr.f32.mxu0 0.0
        %v1991 = vand.u32 %v432, 4294901760
        %1992 = vmatmul.mubr.f32.gmra.mrb[0].mxu0 %v1991
        %v1993 = vpop.f32.mrb[0].mxu0
        %v1994 = vadd.f32 %v1685, %v1993
        %v1995 = vpop.f32.mrb[0].mxu0
        %1996 = vmatprep.mubr.f32.mxu0 0.0
        %v1997 = vand.u32 %v435, 4294901760
        %1998 = vmatmul.mubr.f32.gmra.mrb[0].mxu0 %v1997
        %v1999 = vpop.f32.mrb[0].mxu0
        %v2000 = vadd.f32 %v1693, %v1999
        %v2001 = vpop.f32.mrb[0].mxu0
        %2002 = vmatprep.mubr.f32.mxu0 0.0
        %v2003 = vand.u32 %v438, 4294901760
        %2004 = vmatmul.mubr.f32.gmra.mrb[0].mxu0 %v2003
        %v2005 = vpop.f32.mrb[0].mxu0
        %v2006 = vadd.f32 %v1701, %v2005
        %v2007 = vpop.f32.mrb[0].mxu0
        %2008 = vmatprep.mubr.f32.mxu0 0.0
        %v2009 = vand.u32 %v441, 4294901760
        %2010 = vmatmul.mubr.f32.gmra.mrb[0].mxu0 %v2009
        %v2011 = vpop.f32.mrb[0].mxu0
        %v2012 = vadd.f32 %v1709, %v2011
        %v2013 = vpop.f32.mrb[0].mxu0
        %2014 = vmatprep.mubr.f32.mxu0 0.0
        %v2015 = vand.u32 %v444, 4294901760
        %2016 = vmatmul.mubr.f32.gmra.mrb[0].mxu0 %v2015
        %v2017 = vpop.f32.mrb[0].mxu0
        %v2018 = vadd.f32 %v1717, %v2017
        %v2019 = vpop.f32.mrb[0].mxu0
        %2020 = vmatprep.mubr.f32.mxu0 0.0
        %v2021 = vand.u32 %v447, 4294901760
        %2022 = vmatmul.mubr.f32.gmra.mrb[0].mxu0 %v2021
        %v2023 = vpop.f32.mrb[0].mxu0
        %v2024 = vadd.f32 %v1725, %v2023
        %v2025 = vpop.f32.mrb[0].mxu0
        %2026 = vmatprep.mubr.f32.mxu0 0.0
        %v2027 = vand.u32 %v450, 4294901760
        %2028 = vmatmul.mubr.f32.gmra.mrb[0].mxu0 %v2027
        %v2029 = vpop.f32.mrb[0].mxu0
        %v2030 = vadd.f32 %v1733, %v2029
        %v2031 = vpop.f32.mrb[0].mxu0
        %2032 = vmatprep.mubr.f32.mxu0 0.0
        %v2033 = vand.u32 %v453, 4294901760
        %2034 = vmatmul.mubr.f32.gmra.mrb[0].mxu0 %v2033
        %v2035 = vpop.f32.mrb[0].mxu0
        %v2036 = vadd.f32 %v1741, %v2035
        %v2037 = vpop.f32.mrb[0].mxu0
        %2038 = vmatprep.mubr.f32.mxu0 0.0
        %v2039 = vand.u32 %v456, 4294901760
        %2040 = vmatmul.mubr.f32.gmra.mrb[0].mxu0 %v2039
        %v2041 = vpop.f32.mrb[0].mxu0
        %v2042 = vadd.f32 %v1749, %v2041
        %v2043 = vpop.f32.mrb[0].mxu0
        %2044 = vmatprep.mubr.f32.mxu0 0.0
        %v2045 = vand.u32 %v459, 4294901760
        %2046 = vmatmul.mubr.f32.gmra.mrb[0].mxu0 %v2045
        %v2047 = vpop.f32.mrb[0].mxu0
        %v2048 = vadd.f32 %v1757, %v2047
        %v2049 = vpop.f32.mrb[0].mxu0
        %2050 = vmatprep.mubr.f32.mxu0 0.0
        %v2051 = vand.u32 %v462, 4294901760
        %2052 = vmatmul.mubr.f32.gmra.mrb[0].mxu0 %v2051
        %v2053 = vpop.f32.mrb[0].mxu0
        %v2054 = vadd.f32 %v1765, %v2053
        %v2055 = vpop.f32.mrb[0].mxu0
        %2056 = vmatprep.mubr.f32.mxu0 0.0
        %v2057 = vand.u32 %v465, 4294901760
        %2058 = vmatmul.mubr.f32.gmra.mrb[0].mxu0 %v2057
        %v2059 = vpop.f32.mrb[0].mxu0
        %v2060 = vadd.f32 %v1773, %v2059
        %v2061 = vpop.f32.mrb[0].mxu0
        %2062 = vmatprep.mubr.f32.mxu0 0.0
        %v2063 = vand.u32 %v468, 4294901760
        %2064 = vmatmul.mubr.f32.gmra.mrb[0].mxu0 %v2063
        %v2065 = vpop.f32.mrb[0].mxu0
        %v2066 = vadd.f32 %v1781, %v2065
        %v2067 = vpop.f32.mrb[0].mxu0
        %2068 = vmatprep.mubr.f32.mxu0 0.0
        %v2069 = vand.u32 %v471, 4294901760
        %2070 = vmatmul.mubr.f32.gmra.mrb[0].mxu0 %v2069
        %v2071 = vpop.f32.mrb[0].mxu0
        %v2072 = vadd.f32 %v1789, %v2071
        %v2073 = vpop.f32.mrb[0].mxu0
        %2074 = vmatprep.mubr.f32.mxu0 0.0
        %v2075 = vand.u32 %v474, 4294901760
        %2076 = vmatmul.mubr.f32.gmra.mrb[0].mxu0 %v2075
        %v2077 = vpop.f32.mrb[0].mxu0
        %v2078 = vadd.f32 %v1797, %v2077
        %v2079 = vpop.f32.mrb[0].mxu0
        %2080 = vdwg.mxu0
        %2081 = vmatprep.subr.mxu0 0.0
        %v2082 = vand.u32 %v371, 4294901760
        %2083 = vmatpush1.msra.mxu0 %v2082
        %2084 = vmatprep.subr.mxu0 0.0
        %v2085 = vand.u32 %v372, 4294901760
        %2086 = vmatpush1.msra.mxu0 %v2085
        %2087 = vmatprep.subr.mxu0 0.0
        %v2088 = vand.u32 %v373, 4294901760
        %2089 = vmatpush1.msra.mxu0 %v2088
        %2090 = vmatprep.subr.mxu0 0.0
        %v2091 = vand.u32 %v374, 4294901760
        %2092 = vmatpush1.msra.mxu0 %v2091
        %2093 = vmatprep.subr.mxu0 0.0
        %v2094 = vand.u32 %v375, 4294901760
        %2095 = vmatpush1.msra.mxu0 %v2094
        %2096 = vmatprep.subr.mxu0 0.0
        %v2097 = vand.u32 %v376, 4294901760
        %2098 = vmatpush1.msra.mxu0 %v2097
        %2099 = vmatprep.subr.mxu0 0.0
        %v2100 = vand.u32 %v377, 4294901760
        %2101 = vmatpush1.msra.mxu0 %v2100
        %2102 = vmatprep.subr.mxu0 0.0
        %v2103 = vand.u32 %v378, 4294901760
        %2104 = vmatpush1.msra.mxu0 %v2103
        %2105 = vmatprep.subr.mxu0 0.0
        %2106 = vmatpush1.msra.mxu0 0.0
        %2107 = vmatprep.subr.mxu0 0.0
        %2108 = vmatpush1.msra.mxu0 0.0
        %2109 = vmatprep.subr.mxu0 0.0
        %2110 = vmatpush1.msra.mxu0 0.0
        %2111 = vmatprep.subr.mxu0 0.0
        %2112 = vmatpush1.msra.mxu0 0.0
        %2113 = vmatprep.subr.mxu0 0.0
        %2114 = vmatpush1.msra.mxu0 0.0
        %2115 = vmatprep.subr.mxu0 0.0
        %2116 = vmatpush1.msra.mxu0 0.0
        %2117 = vmatprep.subr.mxu0 0.0
        %2118 = vmatpush1.msra.mxu0 0.0
        %2119 = vmatprep.subr.mxu0 0.0
        %2120 = vmatpush1.msra.mxu0 0.0
        %2121 = vmatprep.subr.mxu0 0.0
        %2122 = vmatpush1.msra.mxu0 0.0
        %2123 = vmatprep.subr.mxu0 0.0
        %2124 = vmatpush1.msra.mxu0 0.0
        %2125 = vmatprep.subr.mxu0 0.0
        %2126 = vmatpush1.msra.mxu0 0.0
        %2127 = vmatprep.subr.mxu0 0.0
        %2128 = vmatpush1.msra.mxu0 0.0
        %2129 = vmatprep.subr.mxu0 0.0
        %2130 = vmatpush1.msra.mxu0 0.0
        %2131 = vmatprep.subr.mxu0 0.0
        %2132 = vmatpush1.msra.mxu0 0.0
        %2133 = vmatprep.subr.mxu0 0.0
        %2134 = vmatpush1.msra.mxu0 0.0
        %2135 = vmatprep.subr.mxu0 0.0
        %2136 = vmatpush1.msra.mxu0 0.0
        %2137 = vmatprep.subr.mxu0 0.0
        %2138 = vmatpush1.msra.mxu0 0.0
        %2139 = vmatprep.subr.mxu0 0.0
        %2140 = vmatpush1.msra.mxu0 0.0
        %2141 = vmatprep.subr.mxu0 0.0
        %2142 = vmatpush1.msra.mxu0 0.0
        %2143 = vmatprep.subr.mxu0 0.0
        %2144 = vmatpush1.msra.mxu0 0.0
        %2145 = vmatprep.subr.mxu0 0.0
        %2146 = vmatpush1.msra.mxu0 0.0
        %2147 = vmatprep.subr.mxu0 0.0
        %2148 = vmatpush1.msra.mxu0 0.0
        %2149 = vmatprep.subr.mxu0 0.0
        %2150 = vmatpush1.msra.mxu0 0.0
        %2151 = vmatprep.subr.mxu0 0.0
        %2152 = vmatpush1.msra.mxu0 0.0
        %2153 = vmatprep.mubr.f32.mxu0 0.0
        %v2154 = vand.u32 %v381, 4294901760
        %2155 = vmatmul.mubr.f32.gmra.mrb[0].mxu0 %v2154
        %v2156 = vpop.f32.mrb[0].mxu0
        %v2157 = vadd.f32 %v1892, %v2156
        %v2158 = vpop.f32.mrb[0].mxu0
        %2159 = vmatprep.mubr.f32.mxu0 0.0
        %v2160 = vand.u32 %v384, 4294901760
        %2161 = vmatmul.mubr.f32.gmra.mrb[0].mxu0 %v2160
        %v2162 = vpop.f32.mrb[0].mxu0
        %v2163 = vadd.f32 %v1898, %v2162
        %v2164 = vpop.f32.mrb[0].mxu0
        %2165 = vmatprep.mubr.f32.mxu0 0.0
        %v2166 = vand.u32 %v387, 4294901760
        %2167 = vmatmul.mubr.f32.gmra.mrb[0].mxu0 %v2166
        %v2168 = vpop.f32.mrb[0].mxu0
        %v2169 = vadd.f32 %v1904, %v2168
        %v2170 = vpop.f32.mrb[0].mxu0
        %2171 = vmatprep.mubr.f32.mxu0 0.0
        %v2172 = vand.u32 %v390, 4294901760
        %2173 = vmatmul.mubr.f32.gmra.mrb[0].mxu0 %v2172
        %v2174 = vpop.f32.mrb[0].mxu0
        %v2175 = vadd.f32 %v1910, %v2174
        %v2176 = vpop.f32.mrb[0].mxu0
        %2177 = vmatprep.mubr.f32.mxu0 0.0
        %v2178 = vand.u32 %v393, 4294901760
        %2179 = vmatmul.mubr.f32.gmra.mrb[0].mxu0 %v2178
        %v2180 = vpop.f32.mrb[0].mxu0
        %v2181 = vadd.f32 %v1916, %v2180
        %v2182 = vpop.f32.mrb[0].mxu0
        %2183 = vmatprep.mubr.f32.mxu0 0.0
        %v2184 = vand.u32 %v396, 4294901760
        %2185 = vmatmul.mubr.f32.gmra.mrb[0].mxu0 %v2184
        %v2186 = vpop.f32.mrb[0].mxu0
        %v2187 = vadd.f32 %v1922, %v2186
        %v2188 = vpop.f32.mrb[0].mxu0
        %2189 = vmatprep.mubr.f32.mxu0 0.0
        %v2190 = vand.u32 %v399, 4294901760
        %2191 = vmatmul.mubr.f32.gmra.mrb[0].mxu0 %v2190
        %v2192 = vpop.f32.mrb[0].mxu0
        %v2193 = vadd.f32 %v1928, %v2192
        %v2194 = vpop.f32.mrb[0].mxu0
        %2195 = vmatprep.mubr.f32.mxu0 0.0
        %v2196 = vand.u32 %v402, 4294901760
        %2197 = vmatmul.mubr.f32.gmra.mrb[0].mxu0 %v2196
        %v2198 = vpop.f32.mrb[0].mxu0
        %v2199 = vadd.f32 %v1934, %v2198
        %v2200 = vpop.f32.mrb[0].mxu0
        %2201 = vmatprep.mubr.f32.mxu0 0.0
        %v2202 = vand.u32 %v405, 4294901760
        %2203 = vmatmul.mubr.f32.gmra.mrb[0].mxu0 %v2202
        %v2204 = vpop.f32.mrb[0].mxu0
        %v2205 = vadd.f32 %v1940, %v2204
        %v2206 = vpop.f32.mrb[0].mxu0
        %2207 = vmatprep.mubr.f32.mxu0 0.0
        %v2208 = vand.u32 %v408, 4294901760
        %2209 = vmatmul.mubr.f32.gmra.mrb[0].mxu0 %v2208
        %v2210 = vpop.f32.mrb[0].mxu0
        %v2211 = vadd.f32 %v1946, %v2210
        %v2212 = vpop.f32.mrb[0].mxu0
        %2213 = vmatprep.mubr.f32.mxu0 0.0
        %v2214 = vand.u32 %v411, 4294901760
        %2215 = vmatmul.mubr.f32.gmra.mrb[0].mxu0 %v2214
        %v2216 = vpop.f32.mrb[0].mxu0
        %v2217 = vadd.f32 %v1952, %v2216
        %v2218 = vpop.f32.mrb[0].mxu0
        %2219 = vmatprep.mubr.f32.mxu0 0.0
        %v2220 = vand.u32 %v414, 4294901760
        %2221 = vmatmul.mubr.f32.gmra.mrb[0].mxu0 %v2220
        %v2222 = vpop.f32.mrb[0].mxu0
        %v2223 = vadd.f32 %v1958, %v2222
        %v2224 = vpop.f32.mrb[0].mxu0
        %2225 = vmatprep.mubr.f32.mxu0 0.0
        %v2226 = vand.u32 %v417, 4294901760
        %2227 = vmatmul.mubr.f32.gmra.mrb[0].mxu0 %v2226
        %v2228 = vpop.f32.mrb[0].mxu0
        %v2229 = vadd.f32 %v1964, %v2228
        %v2230 = vpop.f32.mrb[0].mxu0
        %2231 = vmatprep.mubr.f32.mxu0 0.0
        %v2232 = vand.u32 %v420, 4294901760
        %2233 = vmatmul.mubr.f32.gmra.mrb[0].mxu0 %v2232
        %v2234 = vpop.f32.mrb[0].mxu0
        %v2235 = vadd.f32 %v1970, %v2234
        %v2236 = vpop.f32.mrb[0].mxu0
        %2237 = vmatprep.mubr.f32.mxu0 0.0
        %v2238 = vand.u32 %v423, 4294901760
        %2239 = vmatmul.mubr.f32.gmra.mrb[0].mxu0 %v2238
        %v2240 = vpop.f32.mrb[0].mxu0
        %v2241 = vadd.f32 %v1976, %v2240
        %v2242 = vpop.f32.mrb[0].mxu0
        %2243 = vmatprep.mubr.f32.mxu0 0.0
        %v2244 = vand.u32 %v426, 4294901760
        %2245 = vmatmul.mubr.f32.gmra.mrb[0].mxu0 %v2244
        %v2246 = vpop.f32.mrb[0].mxu0
        %v2247 = vadd.f32 %v1982, %v2246
        %v2248 = vpop.f32.mrb[0].mxu0
        %2249 = vmatprep.mubr.f32.mxu0 0.0
        %v2250 = vand.u32 %v429, 4294901760
        %2251 = vmatmul.mubr.f32.gmra.mrb[0].mxu0 %v2250
        %v2252 = vpop.f32.mrb[0].mxu0
        %v2253 = vadd.f32 %v1988, %v2252
        %v2254 = vpop.f32.mrb[0].mxu0
        %2255 = vmatprep.mubr.f32.mxu0 0.0
        %v2256 = vand.u32 %v432, 4294901760
        %2257 = vmatmul.mubr.f32.gmra.mrb[0].mxu0 %v2256
        %v2258 = vpop.f32.mrb[0].mxu0
        %v2259 = vadd.f32 %v1994, %v2258
        %v2260 = vpop.f32.mrb[0].mxu0
        %2261 = vmatprep.mubr.f32.mxu0 0.0
        %v2262 = vand.u32 %v435, 4294901760
        %2263 = vmatmul.mubr.f32.gmra.mrb[0].mxu0 %v2262
        %v2264 = vpop.f32.mrb[0].mxu0
        %v2265 = vadd.f32 %v2000, %v2264
        %v2266 = vpop.f32.mrb[0].mxu0
        %2267 = vmatprep.mubr.f32.mxu0 0.0
        %v2268 = vand.u32 %v438, 4294901760
        %2269 = vmatmul.mubr.f32.gmra.mrb[0].mxu0 %v2268
        %v2270 = vpop.f32.mrb[0].mxu0
        %v2271 = vadd.f32 %v2006, %v2270
        %v2272 = vpop.f32.mrb[0].mxu0
        %2273 = vmatprep.mubr.f32.mxu0 0.0
        %v2274 = vand.u32 %v441, 4294901760
        %2275 = vmatmul.mubr.f32.gmra.mrb[0].mxu0 %v2274
        %v2276 = vpop.f32.mrb[0].mxu0
        %v2277 = vadd.f32 %v2012, %v2276
        %v2278 = vpop.f32.mrb[0].mxu0
        %2279 = vmatprep.mubr.f32.mxu0 0.0
        %v2280 = vand.u32 %v444, 4294901760
        %2281 = vmatmul.mubr.f32.gmra.mrb[0].mxu0 %v2280
        %v2282 = vpop.f32.mrb[0].mxu0
        %v2283 = vadd.f32 %v2018, %v2282
        %v2284 = vpop.f32.mrb[0].mxu0
        %2285 = vmatprep.mubr.f32.mxu0 0.0
        %v2286 = vand.u32 %v447, 4294901760
        %2287 = vmatmul.mubr.f32.gmra.mrb[0].mxu0 %v2286
        %v2288 = vpop.f32.mrb[0].mxu0
        %v2289 = vadd.f32 %v2024, %v2288
        %v2290 = vpop.f32.mrb[0].mxu0
        %2291 = vmatprep.mubr.f32.mxu0 0.0
        %v2292 = vand.u32 %v450, 4294901760
        %2293 = vmatmul.mubr.f32.gmra.mrb[0].mxu0 %v2292
        %v2294 = vpop.f32.mrb[0].mxu0
        %v2295 = vadd.f32 %v2030, %v2294
        %v2296 = vpop.f32.mrb[0].mxu0
        %2297 = vmatprep.mubr.f32.mxu0 0.0
        %v2298 = vand.u32 %v453, 4294901760
        %2299 = vmatmul.mubr.f32.gmra.mrb[0].mxu0 %v2298
        %v2300 = vpop.f32.mrb[0].mxu0
        %v2301 = vadd.f32 %v2036, %v2300
        %v2302 = vpop.f32.mrb[0].mxu0
        %2303 = vmatprep.mubr.f32.mxu0 0.0
        %v2304 = vand.u32 %v456, 4294901760
        %2305 = vmatmul.mubr.f32.gmra.mrb[0].mxu0 %v2304
        %v2306 = vpop.f32.mrb[0].mxu0
        %v2307 = vadd.f32 %v2042, %v2306
        %v2308 = vpop.f32.mrb[0].mxu0
        %2309 = vmatprep.mubr.f32.mxu0 0.0
        %v2310 = vand.u32 %v459, 4294901760
        %2311 = vmatmul.mubr.f32.gmra.mrb[0].mxu0 %v2310
        %v2312 = vpop.f32.mrb[0].mxu0
        %v2313 = vadd.f32 %v2048, %v2312
        %v2314 = vpop.f32.mrb[0].mxu0
        %2315 = vmatprep.mubr.f32.mxu0 0.0
        %v2316 = vand.u32 %v462, 4294901760
        %2317 = vmatmul.mubr.f32.gmra.mrb[0].mxu0 %v2316
        %v2318 = vpop.f32.mrb[0].mxu0
        %v2319 = vadd.f32 %v2054, %v2318
        %v2320 = vpop.f32.mrb[0].mxu0
        %2321 = vmatprep.mubr.f32.mxu0 0.0
        %v2322 = vand.u32 %v465, 4294901760
        %2323 = vmatmul.mubr.f32.gmra.mrb[0].mxu0 %v2322
        %v2324 = vpop.f32.mrb[0].mxu0
        %v2325 = vadd.f32 %v2060, %v2324
        %v2326 = vpop.f32.mrb[0].mxu0
        %2327 = vmatprep.mubr.f32.mxu0 0.0
        %v2328 = vand.u32 %v468, 4294901760
        %2329 = vmatmul.mubr.f32.gmra.mrb[0].mxu0 %v2328
        %v2330 = vpop.f32.mrb[0].mxu0
        %v2331 = vadd.f32 %v2066, %v2330
        %v2332 = vpop.f32.mrb[0].mxu0
        %2333 = vmatprep.mubr.f32.mxu0 0.0
        %v2334 = vand.u32 %v471, 4294901760
        %2335 = vmatmul.mubr.f32.gmra.mrb[0].mxu0 %v2334
        %v2336 = vpop.f32.mrb[0].mxu0
        %v2337 = vadd.f32 %v2072, %v2336
        %v2338 = vpop.f32.mrb[0].mxu0
        %2339 = vmatprep.mubr.f32.mxu0 0.0
        %v2340 = vand.u32 %v474, 4294901760
        %2341 = vmatmul.mubr.f32.gmra.mrb[0].mxu0 %v2340
        %v2342 = vpop.f32.mrb[0].mxu0
        %v2343 = vadd.f32 %v2078, %v2342
        %v2344 = vpop.f32.mrb[0].mxu0
        %2345 = vdwg.mxu0
        %2346 = vst [vmem:[%s137] sm:$0xff] %v2157
        %2347 = vst [vmem:[%s137 + $0x8] sm:$0xff] %v2163
        %2348 = vst [vmem:[%s137 + $0x10] sm:$0xff] %v2169
        %2349 = vst [vmem:[%s137 + $0x18] sm:$0xff] %v2175
        %2350 = vst [vmem:[%s137 + $0x20] sm:$0xff] %v2181
        %2351 = vst [vmem:[%s137 + $0x28] sm:$0xff] %v2187
        %2352 = vst [vmem:[%s137 + $0x30] sm:$0xff] %v2193
        %2353 = vst [vmem:[%s137 + $0x38] sm:$0xff] %v2199
        %2354 = vst [vmem:[%s137 + $0x40] sm:$0xff] %v2205
        %2355 = vst [vmem:[%s137 + $0x48] sm:$0xff] %v2211
        %2356 = vst [vmem:[%s137 + $0x50] sm:$0xff] %v2217
        %2357 = vst [vmem:[%s137 + $0x58] sm:$0xff] %v2223
        %2358 = vst [vmem:[%s137 + $0x60] sm:$0xff] %v2229
        %2359 = vst [vmem:[%s137 + $0x68] sm:$0xff] %v2235
        %2360 = vst [vmem:[%s137 + $0x70] sm:$0xff] %v2241
        %2361 = vst [vmem:[%s137 + $0x78] sm:$0xff] %v2247
        %2362 = vst [vmem:[%s137 + $0x80] sm:$0xff] %v2253
        %2363 = vst [vmem:[%s137 + $0x88] sm:$0xff] %v2259
        %2364 = vst [vmem:[%s137 + $0x90] sm:$0xff] %v2265
        %2365 = vst [vmem:[%s137 + $0x98] sm:$0xff] %v2271
        %2366 = vst [vmem:[%s137 + $0xa0] sm:$0xff] %v2277
        %2367 = vst [vmem:[%s137 + $0xa8] sm:$0xff] %v2283
        %2368 = vst [vmem:[%s137 + $0xb0] sm:$0xff] %v2289
        %2369 = vst [vmem:[%s137 + $0xb8] sm:$0xff] %v2295
        %2370 = vst [vmem:[%s137 + $0xc0] sm:$0xff] %v2301
        %2371 = vst [vmem:[%s137 + $0xc8] sm:$0xff] %v2307
        %2372 = vst [vmem:[%s137 + $0xd0] sm:$0xff] %v2313
        %2373 = vst [vmem:[%s137 + $0xd8] sm:$0xff] %v2319
        %2374 = vst [vmem:[%s137 + $0xe0] sm:$0xff] %v2325
        %2375 = vst [vmem:[%s137 + $0xe8] sm:$0xff] %v2331
        %2376 = vst [vmem:[%s137 + $0xf0] sm:$0xff] %v2337
        %2377 = vst [vmem:[%s137 + $0xf8] sm:$0xff] %v2343
        %s2378 = sand.u32 %s71, 1
        %s2379 = scalar_lea.sflag [#allocation3], %s2378
        %s2380 = sand.u32 %s71, 1
        %s2381 = smul.addr %s2380, 256
        %s2382 = scalar_lea.vmem [#allocation2], %s2381
        // Predicated region
        $region29: #{tpu_custom_call.1} parent=27 // pred_check
          %p2383 = pneg %p81
        $region30: #{tpu_custom_call.1} parent=27 // pred_check_branch
          %2385 = sbr.rel (%p2383) target = $region32
        $region31: #{tpu_custom_call.1} parent=27 // pred_region
          %s2386 = smul.u32 32, %s16
          %s2388 = ssub.s32 4096, 4096
          %2389 = vsyncadd %s2379, %s2388
          %s2390 = smul.addr %s2386, 128
          %s2391 = scalar_lea.hbm %s2, %s2390
          %s2392 = sshll.u32 %s2382, 4
          %s2393 = int_to_ptr.vmem [resolvable:$true] %s2392
          %2398 = dma.vmem_to_hbm [thread:$0]  %s2393, 4096, %s2391, %s2379, 128, 128, 8
        $region32: #{tpu_custom_call.1} parent=27 // pred_fallthru
          _
      $region28: #{tpu_custom_call.1} parent=5 // pred_fallthru
        _
      %p2399 = scmp.le.s32.totalorder 2, %s11
      // Predicated region
      $region33: #{tpu_custom_call.1} parent=5 // pred_check
        %p2400 = pneg %p2399
      $region34: #{tpu_custom_call.1} parent=5 // pred_check_branch
        %2402 = sbr.rel (%p2400) target = $region36
      $region35: #{tpu_custom_call.1} parent=5 // pred_region
        %s2403 = ssub.s32 %s11, 2
        // Predicated region
        $region37: #{tpu_custom_call.1} parent=35 // pred_check
          %p2404 = pneg %p87
        $region38: #{tpu_custom_call.1} parent=35 // pred_check_branch
          %2406 = sbr.rel (%p2404) target = $region40
        $region39: #{tpu_custom_call.1} parent=35 // pred_region
          %s2407 = sand.u32 %s72, 1
          %s2408 = scalar_lea.sflag [#allocation3], %s2407
          %s2409 = sand.u32 %s72, 1
          %s2410 = smul.addr %s2409, 256
          %s2411 = scalar_lea.vmem [#allocation2], %s2410
          %2412 = dma.done %s2408, 4096
        $region40: #{tpu_custom_call.1} parent=35 // pred_fallthru
          _
      $region36: #{tpu_custom_call.1} parent=5 // pred_fallthru
        _
    $region6: #{tpu_custom_call.1} parent=1 // loop_footer
      %s15 = sadd.s32 1, %s11
    $region7: #{tpu_custom_call.1} parent=1 // loop_footer_branch
      %10 = sbr.rel target = $region3
    $region8: #{tpu_custom_call.1} parent=1 // loop_exit
      _
    %2413 = vsyncpa [#allocation3], 1
    %s2414 = scalar_lea.sflag [#allocation3], 1
    %2415 = vsyncpa %s2414, 1

</llo_original>
